<compile_context>
chip_gen: v5e
topology: v5e:2x2
jax: 0.10.0
libtpu: 0.0.40
codegen_flags: <defaults>
</compile_context>

<pallas_src>
import functools

import jax
import jax.numpy as jnp
import numpy as np
from jax.experimental import pallas as pl
from jax.experimental.pallas import tpu as pltpu


def _fbf_lstm_kernel(num_layers, x_ref, wih0_ref, whh0_ref, b0_ref,
                     wihr_ref, whhr_ref, brest_ref, wfc_ref, bfc_ref, out_ref):
    """Full forward pass for one (block_N, T) row block.

    x_ref     : (bN, T)   f32        scalar input per row per timestep
    wih0_ref  : (1, 4H)   f32        layer-0 input weights (torch weight_ih_l0.T)
    whh0_ref  : (H, 4H)   bf16       layer-0 hidden weights (transposed)
    b0_ref    : (1, 4H)   f32        layer-0 bias (b_ih + b_hh)
    wihr_ref  : (max(L-1,1), H, 4H) bf16   layers>=1 input weights (transposed)
    whhr_ref  : (max(L-1,1), H, 4H) bf16   layers>=1 hidden weights (transposed)
    brest_ref : (max(L-1,1), 1, 4H) f32    layers>=1 bias (b_ih + b_hh)
    wfc_ref   : (H, O)    bf16       fc weight (transposed)
    bfc_ref   : (1, O)    f32        fc bias
    out_ref   : (bN, O)   f32
    """
    bN, T = x_ref.shape
    H, G = whh0_ref.shape               # G == 4*H, torch gate order [i, f, g, o]
    L = num_layers
    f32 = jnp.float32
    bf16 = jnp.bfloat16

    # Hoisted small (1, G) constants; no persistent (bN, G) broadcasts.
    lane = jax.lax.broadcasted_iota(jnp.int32, (1, G), 1)
    is_g = jnp.logical_and(lane >= 2 * H, lane < 3 * H)          # tanh lanes
    one_f = jnp.float32(1.0)
    half_f = jnp.float32(0.5)
    zero_f = jnp.float32(0.0)
    # sigmoid(x) = 0.5*tanh(0.5*x) + 0.5  -> one full-width EUP pass per cell.
    pre_scale = jnp.where(is_g, one_f, half_f)                   # (1, G)
    post_scale = pre_scale                                       # 1.0 on g, 0.5 else
    post_off = jnp.where(is_g, zero_f, half_f)                   # 0.0 on g, 0.5 else

    wih0 = wih0_ref[...]                                         # (1, G)  f32
    b0 = b0_ref[...]                                             # (1, G)  f32
    whh0 = whh0_ref[...]                                         # (H, G)  bf16
    wih_r = [wihr_ref[l] for l in range(L - 1)]                  # (H, G)  bf16
    whh_r = [whhr_ref[l] for l in range(L - 1)]                  # (H, G)  bf16
    b_r = [brest_ref[l] for l in range(L - 1)]                   # (1, G)  f32

    # Layer-0 input gates for every timestep, bias folded in, computed off the
    # recurrent critical path (input_size == 1 -> per-step outer product).
    xs = x_ref[...]                                              # (bN, T) f32
    x_gates = [xs[:, t:t + 1] * wih0 + b0 for t in range(T)]     # T x (bN, G)

    def cell(gates, c_prev):
        pre = gates * pre_scale                                  # (bN, G)
        th = jnp.tanh(pre)                                       # single EUP pass
        act = th * post_scale + post_off                         # sigmoid/tanh mix
        i = act[:, 0:H]
        f = act[:, H:2 * H]
        g = act[:, 2 * H:3 * H]
        o = act[:, 3 * H:4 * H]
        c = f * c_prev + i * g
        h = o * jnp.tanh(c)
        return h, c

    h = [jnp.zeros((bN, H), f32) for _ in range(L)]
    c = [jnp.zeros((bN, H), f32) for _ in range(L)]

    # Fused layer cascade inside a single unrolled time loop (T small & static).
    for t in range(T):
        # layer 0: precomputed input term + recurrent matmul (bf16 MXU, f32 acc)
        gates = x_gates[t] + jnp.dot(h[0].astype(bf16), whh0,
                                     preferred_element_type=f32)
        h[0], c[0] = cell(gates, c[0])
        # layers 1..L-1: two accumulating dots, no lane concat
        for l in range(1, L):
            gates = (jnp.dot(h[l - 1].astype(bf16), wih_r[l - 1],
                             preferred_element_type=f32)
                     + jnp.dot(h[l].astype(bf16), whh_r[l - 1],
                               preferred_element_type=f32)
                     + b_r[l - 1])
            h[l], c[l] = cell(gates, c[l])

    # final Linear on last-timestep hidden state of the top layer
    out = jnp.dot(h[L - 1].astype(bf16), wfc_ref[...],
                  preferred_element_type=f32) + bfc_ref[...]
    out_ref[...] = out


def _round_up(a, m):
    return ((a + m - 1) // m) * m


def fbf_lstm_forward(x, params, num_flow, output_len):
    """JAX wrapper reproducing FBF_LSTM.forward exactly. x: (B, T, F) -> (B, O, F)."""
    B, T, F = x.shape
    assert F == num_flow
    # torch: permute(0,2,1) -> (B, F, T); reshape -> (B*F, T, 1).  input_size == 1,
    # so we carry xs as (B*F, T) rows of scalars.
    xs = jnp.transpose(x, (0, 2, 1)).reshape(B * F, T).astype(jnp.float32)
    N = B * F

    w_hh = params["w_hh"]                                   # (L, H, 4H)
    L, H, G = w_hh.shape
    bf16 = jnp.bfloat16
    # MXU operands in bf16 (f32 accumulation in-kernel); VPU/bias operands stay f32.
    wih0 = params["w_ih0"].astype(jnp.float32)              # (1, 4H)
    whh0 = w_hh[0].astype(bf16)                              # (H, 4H)
    b0 = params["b"][0].astype(jnp.float32)                  # (1, 4H)
    if L > 1:
        wih_rest = params["w_ih_rest"].astype(bf16)          # (L-1, H, 4H)
        whh_rest = w_hh[1:].astype(bf16)                     # (L-1, H, 4H)
        brest = params["b"][1:].astype(jnp.float32)          # (L-1, 1, 4H)
    else:
        wih_rest = jnp.zeros((1, H, G), bf16)
        whh_rest = jnp.zeros((1, H, G), bf16)
        brest = jnp.zeros((1, 1, G), jnp.float32)
    wfc = params["w_fc"].astype(bf16)                        # (H, O)
    bfc = params["b_fc"].astype(jnp.float32)                 # (1, O)

    # Row-block grid: rows are independent.  block_N is a multiple of 8 sublanes,
    # capped at 128 to keep vreg pressure (and spills) down, and chosen so the
    # grid has >= 2 blocks whenever N allows (feeds both v7x TensorCores).
    if N <= 8:
        block_N = _round_up(N, 8)
    else:
        block_N = min(128, _round_up(-(-N // 2), 8))
    N_pad = _round_up(N, block_N)
    if N_pad != N:
        xs = jnp.pad(xs, ((0, N_pad - N), (0, 0)))

    kernel = functools.partial(_fbf_lstm_kernel, L)
    out = pl.pallas_call(
        kernel,
        out_shape=jax.ShapeDtypeStruct((N_pad, output_len), jnp.float32),
        grid=(N_pad // block_N,),
        in_specs=[
            pl.BlockSpec((block_N, T), lambda i: (i, 0)),           # xs: blocked over rows
            pl.BlockSpec((1, G), lambda i: (0, 0)),                 # weights: VMEM-resident
            pl.BlockSpec((H, G), lambda i: (0, 0)),
            pl.BlockSpec((1, G), lambda i: (0, 0)),
            pl.BlockSpec(wih_rest.shape, lambda i: (0, 0, 0)),
            pl.BlockSpec(whh_rest.shape, lambda i: (0, 0, 0)),
            pl.BlockSpec(brest.shape, lambda i: (0, 0, 0)),
            pl.BlockSpec((H, output_len), lambda i: (0, 0)),
            pl.BlockSpec((1, output_len), lambda i: (0, 0)),
        ],
        out_specs=pl.BlockSpec((block_N, output_len), lambda i: (i, 0)),
        compiler_params=pltpu.CompilerParams(
            dimension_semantics=("parallel",)),   # v7x: shard row blocks across both TCs
    )(xs, wih0, whh0, b0, wih_rest, whh_rest, brest, wfc, bfc)

    out = out[:N].reshape(B, num_flow, output_len)
    # torch: reshape(-1, num_flow, output_len) -> permute(0, 2, 1)
    return jnp.transpose(out, (0, 2, 1))


def init_params(key, hidden, layers, output_len):
    """Deterministic synthetic weights (torch-style uniform(-1/sqrt(H), 1/sqrt(H)))."""
    H, L, O = hidden, layers, output_len
    bound = 1.0 / float(np.sqrt(H))
    keys = list(jax.random.split(key, 6 * L + 4))
    it = iter(keys)

    def u(shape):
        return jax.random.uniform(next(it), shape, jnp.float32, -bound, bound)

    w_ih0 = u((1, 4 * H))                                             # torch (4H,1) transposed
    if L > 1:
        w_ih_rest = jnp.stack([u((H, 4 * H)) for _ in range(L - 1)])  # (L-1, H, 4H)
    else:
        w_ih_rest = jnp.zeros((1, H, 4 * H), jnp.float32)
    w_hh = jnp.stack([u((H, 4 * H)) for _ in range(L)])               # (L, H, 4H)
    b = jnp.stack([u((1, 4 * H)) + u((1, 4 * H)) for _ in range(L)])  # b_ih + b_hh, (L,1,4H)
    w_fc = u((H, O))                                                  # torch (O,H) transposed
    b_fc = u((1, O))
    return dict(w_ih0=w_ih0, w_ih_rest=w_ih_rest, w_hh=w_hh, b=b, w_fc=w_fc, b_fc=b_fc)


def reference_forward(x, params, num_flow, output_len):
    """Pure-JAX reference (mirrors torch nn.LSTM + Linear semantics, eval mode, f32)."""
    B, T, F = x.shape
    xs = jnp.transpose(x, (0, 2, 1)).reshape(B * F, T).astype(jnp.float32)
    N = B * F
    L, H, _ = params["w_hh"].shape
    seq = xs[:, :, None]                                              # (N, T, 1)
    for l in range(L):
        w_ih = params["w_ih0"] if l == 0 else params["w_ih_rest"][l - 1]
        w_hh = params["w_hh"][l]
        b = params["b"][l]
        h = jnp.zeros((N, H), jnp.float32)
        c = jnp.zeros((N, H), jnp.float32)
        outs = []
        for t in range(T):
            gates = seq[:, t, :] @ w_ih + h @ w_hh + b
            i = jax.nn.sigmoid(gates[:, :H])
            f = jax.nn.sigmoid(gates[:, H:2 * H])
            g = jnp.tanh(gates[:, 2 * H:3 * H])
            o = jax.nn.sigmoid(gates[:, 3 * H:])
            c = f * c + i * g
            h = o * jnp.tanh(c)
            outs.append(h)
        seq = jnp.stack(outs, axis=1)
    out = seq[:, -1, :] @ params["w_fc"] + params["b_fc"]
    out = out.reshape(B, num_flow, output_len)
    return jnp.transpose(out, (0, 2, 1))


if __name__ == "__main__":
    # args: num_mon_flow=4, hidden=32, layers=2, dropout=0.0, output_len=4
    B, T, F = 2, 8, 4
    H, L, O = 32, 2, 4

    key = jax.random.PRNGKey(0)
    kx, kp = jax.random.split(key)
    x = jax.random.normal(kx, (B, T, F), jnp.float32)
    params = init_params(kp, H, L, O)

    fwd = jax.jit(fbf_lstm_forward, static_argnames=("num_flow", "output_len"))
    y = fwd(x, params, num_flow=F, output_len=O)
    y = jax.block_until_ready(y)
    assert y.shape == (B, O, F) and y.dtype == jnp.float32

    y_ref = reference_forward(x, params, num_flow=F, output_len=O)
    # bf16 MXU operands (f32 accumulation) -> loosened tolerance vs the f32 reference.
    np.testing.assert_allclose(np.asarray(y), np.asarray(y_ref), rtol=2e-2, atol=2e-2)

    print("KERNEL_OK")
</pallas_src>

<mosaic_0001>
module attributes {stable_mosaic.version = 11 : i64} {
  func.func @_fbf_lstm_kernel(%arg0: i32, %arg1: memref<8x8xf32, #tpu.memory_space<vmem>>, %arg2: memref<1x128xf32, #tpu.memory_space<vmem>>, %arg3: memref<32x128xbf16, #tpu.memory_space<vmem>>, %arg4: memref<1x128xf32, #tpu.memory_space<vmem>>, %arg5: memref<1x32x128xbf16, #tpu.memory_space<vmem>>, %arg6: memref<1x32x128xbf16, #tpu.memory_space<vmem>>, %arg7: memref<1x1x128xf32, #tpu.memory_space<vmem>>, %arg8: memref<32x4xbf16, #tpu.memory_space<vmem>>, %arg9: memref<1x4xf32, #tpu.memory_space<vmem>>, %arg10: memref<8x4xf32, #tpu.memory_space<vmem>>) attributes {dimension_semantics = [#tpu.dimension_semantics<parallel>], iteration_bounds = array<i64: 1>, scalar_prefetch = 0 : i64, scratch_operands = 0 : i64, tpu.core_type = #tpu.core_type<tc>, window_params = [{transform_indices = @transform_0, window_bounds = array<i64: 8, 8>}, {pipeline_mode = #tpu.pipeline_mode<synchronous>, transform_indices = @transform_1, window_bounds = array<i64: 1, 128>}, {pipeline_mode = #tpu.pipeline_mode<synchronous>, transform_indices = @transform_2, window_bounds = array<i64: 32, 128>}, {pipeline_mode = #tpu.pipeline_mode<synchronous>, transform_indices = @transform_3, window_bounds = array<i64: 1, 128>}, {pipeline_mode = #tpu.pipeline_mode<synchronous>, transform_indices = @transform_4, window_bounds = array<i64: 1, 32, 128>}, {pipeline_mode = #tpu.pipeline_mode<synchronous>, transform_indices = @transform_5, window_bounds = array<i64: 1, 32, 128>}, {pipeline_mode = #tpu.pipeline_mode<synchronous>, transform_indices = @transform_6, window_bounds = array<i64: 1, 1, 128>}, {pipeline_mode = #tpu.pipeline_mode<synchronous>, transform_indices = @transform_7, window_bounds = array<i64: 32, 4>}, {pipeline_mode = #tpu.pipeline_mode<synchronous>, transform_indices = @transform_8, window_bounds = array<i64: 1, 4>}, {transform_indices = @transform_9, window_bounds = array<i64: 8, 4>}]} {
    %0 = tpu.iota {dimensions = array<i32: 1>} : vector<1x128xi32>
    %c64_i32 = arith.constant 64 : i32
    %1 = vector.broadcast %c64_i32 : i32 to vector<1x128xi32>
    %2 = arith.cmpi sge, %0, %1 : vector<1x128xi32>
    %c96_i32 = arith.constant 96 : i32
    %3 = vector.broadcast %c96_i32 : i32 to vector<1x128xi32>
    %4 = arith.cmpi slt, %0, %3 : vector<1x128xi32>
    %5 = arith.andi %2, %4 : vector<1x128xi1>
    %cst = arith.constant 1.000000e+00 : f32
    %cst_0 = arith.constant 5.000000e-01 : f32
    %6 = vector.broadcast %cst : f32 to vector<1x128xf32>
    %7 = vector.broadcast %cst_0 : f32 to vector<1x128xf32>
    %8 = arith.select %5, %6, %7 : vector<1x128xi1>, vector<1x128xf32>
    %cst_1 = arith.constant 0.000000e+00 : f32
    %cst_2 = arith.constant 5.000000e-01 : f32
    %9 = vector.broadcast %cst_1 : f32 to vector<1x128xf32>
    %10 = vector.broadcast %cst_2 : f32 to vector<1x128xf32>
    %11 = arith.select %5, %9, %10 : vector<1x128xi1>, vector<1x128xf32>
    %c0 = arith.constant 0 : index
    %c0_3 = arith.constant 0 : index
    %12 = vector.load %arg2[%c0, %c0_3] : memref<1x128xf32, #tpu.memory_space<vmem>>, vector<1x128xf32>
    %c0_4 = arith.constant 0 : index
    %c0_5 = arith.constant 0 : index
    %13 = vector.load %arg4[%c0_4, %c0_5] : memref<1x128xf32, #tpu.memory_space<vmem>>, vector<1x128xf32>
    %c0_6 = arith.constant 0 : index
    %c0_7 = arith.constant 0 : index
    %14 = vector.load %arg3[%c0_6, %c0_7] : memref<32x128xbf16, #tpu.memory_space<vmem>>, vector<32x128xbf16>
    %c0_8 = arith.constant 0 : index
    %c0_9 = arith.constant 0 : index
    %c0_10 = arith.constant 0 : index
    %15 = vector.load %arg5[%c0_8, %c0_9, %c0_10] : memref<1x32x128xbf16, #tpu.memory_space<vmem>>, vector<1x32x128xbf16>
    %16 = vector.shape_cast %15 : vector<1x32x128xbf16> to vector<32x128xbf16>
    %c0_11 = arith.constant 0 : index
    %c0_12 = arith.constant 0 : index
    %c0_13 = arith.constant 0 : index
    %17 = vector.load %arg6[%c0_11, %c0_12, %c0_13] : memref<1x32x128xbf16, #tpu.memory_space<vmem>>, vector<1x32x128xbf16>
    %18 = vector.shape_cast %17 : vector<1x32x128xbf16> to vector<32x128xbf16>
    %c0_14 = arith.constant 0 : index
    %c0_15 = arith.constant 0 : index
    %c0_16 = arith.constant 0 : index
    %19 = vector.load %arg7[%c0_14, %c0_15, %c0_16] : memref<1x1x128xf32, #tpu.memory_space<vmem>>, vector<1x1x128xf32>
    %20 = vector.shape_cast %19 : vector<1x1x128xf32> to vector<1x128xf32>
    %c0_17 = arith.constant 0 : index
    %c0_18 = arith.constant 0 : index
    %21 = vector.load %arg1[%c0_17, %c0_18] : memref<8x8xf32, #tpu.memory_space<vmem>>, vector<8x8xf32>
    %22 = vector.extract_strided_slice %21 {offsets = [0, 0], sizes = [8, 1], strides = [1, 1]} : vector<8x8xf32> to vector<8x1xf32>
    %23 = vector.broadcast %22 : vector<8x1xf32> to vector<8x128xf32>
    %24 = vector.broadcast %12 : vector<1x128xf32> to vector<8x128xf32>
    %25 = arith.mulf %23, %24 : vector<8x128xf32>
    %26 = vector.broadcast %13 : vector<1x128xf32> to vector<8x128xf32>
    %27 = arith.addf %25, %26 : vector<8x128xf32>
    %28 = vector.extract_strided_slice %21 {offsets = [0, 1], sizes = [8, 1], strides = [1, 1]} : vector<8x8xf32> to vector<8x1xf32>
    %29 = vector.broadcast %28 : vector<8x1xf32> to vector<8x128xf32>
    %30 = vector.broadcast %12 : vector<1x128xf32> to vector<8x128xf32>
    %31 = arith.mulf %29, %30 : vector<8x128xf32>
    %32 = vector.broadcast %13 : vector<1x128xf32> to vector<8x128xf32>
    %33 = arith.addf %31, %32 : vector<8x128xf32>
    %34 = vector.extract_strided_slice %21 {offsets = [0, 2], sizes = [8, 1], strides = [1, 1]} : vector<8x8xf32> to vector<8x1xf32>
    %35 = vector.broadcast %34 : vector<8x1xf32> to vector<8x128xf32>
    %36 = vector.broadcast %12 : vector<1x128xf32> to vector<8x128xf32>
    %37 = arith.mulf %35, %36 : vector<8x128xf32>
    %38 = vector.broadcast %13 : vector<1x128xf32> to vector<8x128xf32>
    %39 = arith.addf %37, %38 : vector<8x128xf32>
    %40 = vector.extract_strided_slice %21 {offsets = [0, 3], sizes = [8, 1], strides = [1, 1]} : vector<8x8xf32> to vector<8x1xf32>
    %41 = vector.broadcast %40 : vector<8x1xf32> to vector<8x128xf32>
    %42 = vector.broadcast %12 : vector<1x128xf32> to vector<8x128xf32>
    %43 = arith.mulf %41, %42 : vector<8x128xf32>
    %44 = vector.broadcast %13 : vector<1x128xf32> to vector<8x128xf32>
    %45 = arith.addf %43, %44 : vector<8x128xf32>
    %46 = vector.extract_strided_slice %21 {offsets = [0, 4], sizes = [8, 1], strides = [1, 1]} : vector<8x8xf32> to vector<8x1xf32>
    %47 = vector.broadcast %46 : vector<8x1xf32> to vector<8x128xf32>
    %48 = vector.broadcast %12 : vector<1x128xf32> to vector<8x128xf32>
    %49 = arith.mulf %47, %48 : vector<8x128xf32>
    %50 = vector.broadcast %13 : vector<1x128xf32> to vector<8x128xf32>
    %51 = arith.addf %49, %50 : vector<8x128xf32>
    %52 = vector.extract_strided_slice %21 {offsets = [0, 5], sizes = [8, 1], strides = [1, 1]} : vector<8x8xf32> to vector<8x1xf32>
    %53 = vector.broadcast %52 : vector<8x1xf32> to vector<8x128xf32>
    %54 = vector.broadcast %12 : vector<1x128xf32> to vector<8x128xf32>
    %55 = arith.mulf %53, %54 : vector<8x128xf32>
    %56 = vector.broadcast %13 : vector<1x128xf32> to vector<8x128xf32>
    %57 = arith.addf %55, %56 : vector<8x128xf32>
    %58 = vector.extract_strided_slice %21 {offsets = [0, 6], sizes = [8, 1], strides = [1, 1]} : vector<8x8xf32> to vector<8x1xf32>
    %59 = vector.broadcast %58 : vector<8x1xf32> to vector<8x128xf32>
    %60 = vector.broadcast %12 : vector<1x128xf32> to vector<8x128xf32>
    %61 = arith.mulf %59, %60 : vector<8x128xf32>
    %62 = vector.broadcast %13 : vector<1x128xf32> to vector<8x128xf32>
    %63 = arith.addf %61, %62 : vector<8x128xf32>
    %64 = vector.extract_strided_slice %21 {offsets = [0, 7], sizes = [8, 1], strides = [1, 1]} : vector<8x8xf32> to vector<8x1xf32>
    %65 = vector.broadcast %64 : vector<8x1xf32> to vector<8x128xf32>
    %66 = vector.broadcast %12 : vector<1x128xf32> to vector<8x128xf32>
    %67 = arith.mulf %65, %66 : vector<8x128xf32>
    %68 = vector.broadcast %13 : vector<1x128xf32> to vector<8x128xf32>
    %69 = arith.addf %67, %68 : vector<8x128xf32>
    %cst_19 = arith.constant 0.000000e+00 : f32
    %70 = vector.broadcast %cst_19 : f32 to vector<8x32xf32>
    %cst_20 = arith.constant 0.000000e+00 : f32
    %71 = vector.broadcast %cst_20 : f32 to vector<8x32xf32>
    %cst_21 = arith.constant 0.000000e+00 : f32
    %72 = vector.broadcast %cst_21 : f32 to vector<8x32xf32>
    %cst_22 = arith.constant 0.000000e+00 : f32
    %73 = vector.broadcast %cst_22 : f32 to vector<8x32xf32>
    %74 = arith.truncf %70 : vector<8x32xf32> to vector<8x32xbf16>
    %cst_23 = arith.constant dense<0.000000e+00> : vector<8x128xf32>
    %75 = tpu.matmul %74, %14, %cst_23 {dimension_numbers = #tpu.dot_dimension_numbers<[1], [0], [0], [1], [0, 0, 1, 1], [], []>} : vector<8x32xbf16>, vector<32x128xbf16>, vector<8x128xf32> -> vector<8x128xf32>
    %76 = arith.addf %27, %75 : vector<8x128xf32>
    %77 = vector.broadcast %8 : vector<1x128xf32> to vector<8x128xf32>
    %78 = arith.mulf %76, %77 : vector<8x128xf32>
    %79 = math.tanh %78 : vector<8x128xf32>
    %80 = vector.broadcast %8 : vector<1x128xf32> to vector<8x128xf32>
    %81 = arith.mulf %79, %80 : vector<8x128xf32>
    %82 = vector.broadcast %11 : vector<1x128xf32> to vector<8x128xf32>
    %83 = arith.addf %81, %82 : vector<8x128xf32>
    %84 = vector.extract_strided_slice %83 {offsets = [0, 0], sizes = [8, 32], strides = [1, 1]} : vector<8x128xf32> to vector<8x32xf32>
    %85 = vector.extract_strided_slice %83 {offsets = [0, 32], sizes = [8, 32], strides = [1, 1]} : vector<8x128xf32> to vector<8x32xf32>
    %86 = vector.extract_strided_slice %83 {offsets = [0, 64], sizes = [8, 32], strides = [1, 1]} : vector<8x128xf32> to vector<8x32xf32>
    %87 = vector.extract_strided_slice %83 {offsets = [0, 96], sizes = [8, 32], strides = [1, 1]} : vector<8x128xf32> to vector<8x32xf32>
    %88 = arith.mulf %85, %72 : vector<8x32xf32>
    %89 = arith.mulf %84, %86 : vector<8x32xf32>
    %90 = arith.addf %88, %89 : vector<8x32xf32>
    %91 = math.tanh %90 : vector<8x32xf32>
    %92 = arith.mulf %87, %91 : vector<8x32xf32>
    %93 = arith.truncf %92 : vector<8x32xf32> to vector<8x32xbf16>
    %cst_24 = arith.constant dense<0.000000e+00> : vector<8x128xf32>
    %94 = tpu.matmul %93, %16, %cst_24 {dimension_numbers = #tpu.dot_dimension_numbers<[1], [0], [0], [1], [0, 0, 1, 1], [], []>} : vector<8x32xbf16>, vector<32x128xbf16>, vector<8x128xf32> -> vector<8x128xf32>
    %95 = arith.truncf %71 : vector<8x32xf32> to vector<8x32xbf16>
    %cst_25 = arith.constant dense<0.000000e+00> : vector<8x128xf32>
    %96 = tpu.matmul %95, %18, %cst_25 {dimension_numbers = #tpu.dot_dimension_numbers<[1], [0], [0], [1], [0, 0, 1, 1], [], []>} : vector<8x32xbf16>, vector<32x128xbf16>, vector<8x128xf32> -> vector<8x128xf32>
    %97 = arith.addf %94, %96 : vector<8x128xf32>
    %98 = vector.broadcast %20 : vector<1x128xf32> to vector<8x128xf32>
    %99 = arith.addf %97, %98 : vector<8x128xf32>
    %100 = vector.broadcast %8 : vector<1x128xf32> to vector<8x128xf32>
    %101 = arith.mulf %99, %100 : vector<8x128xf32>
    %102 = math.tanh %101 : vector<8x128xf32>
    %103 = vector.broadcast %8 : vector<1x128xf32> to vector<8x128xf32>
    %104 = arith.mulf %102, %103 : vector<8x128xf32>
    %105 = vector.broadcast %11 : vector<1x128xf32> to vector<8x128xf32>
    %106 = arith.addf %104, %105 : vector<8x128xf32>
    %107 = vector.extract_strided_slice %106 {offsets = [0, 0], sizes = [8, 32], strides = [1, 1]} : vector<8x128xf32> to vector<8x32xf32>
    %108 = vector.extract_strided_slice %106 {offsets = [0, 32], sizes = [8, 32], strides = [1, 1]} : vector<8x128xf32> to vector<8x32xf32>
    %109 = vector.extract_strided_slice %106 {offsets = [0, 64], sizes = [8, 32], strides = [1, 1]} : vector<8x128xf32> to vector<8x32xf32>
    %110 = vector.extract_strided_slice %106 {offsets = [0, 96], sizes = [8, 32], strides = [1, 1]} : vector<8x128xf32> to vector<8x32xf32>
    %111 = arith.mulf %108, %73 : vector<8x32xf32>
    %112 = arith.mulf %107, %109 : vector<8x32xf32>
    %113 = arith.addf %111, %112 : vector<8x32xf32>
    %114 = math.tanh %113 : vector<8x32xf32>
    %115 = arith.mulf %110, %114 : vector<8x32xf32>
    %116 = arith.truncf %92 : vector<8x32xf32> to vector<8x32xbf16>
    %cst_26 = arith.constant dense<0.000000e+00> : vector<8x128xf32>
    %117 = tpu.matmul %116, %14, %cst_26 {dimension_numbers = #tpu.dot_dimension_numbers<[1], [0], [0], [1], [0, 0, 1, 1], [], []>} : vector<8x32xbf16>, vector<32x128xbf16>, vector<8x128xf32> -> vector<8x128xf32>
    %118 = arith.addf %33, %117 : vector<8x128xf32>
    %119 = vector.broadcast %8 : vector<1x128xf32> to vector<8x128xf32>
    %120 = arith.mulf %118, %119 : vector<8x128xf32>
    %121 = math.tanh %120 : vector<8x128xf32>
    %122 = vector.broadcast %8 : vector<1x128xf32> to vector<8x128xf32>
    %123 = arith.mulf %121, %122 : vector<8x128xf32>
    %124 = vector.broadcast %11 : vector<1x128xf32> to vector<8x128xf32>
    %125 = arith.addf %123, %124 : vector<8x128xf32>
    %126 = vector.extract_strided_slice %125 {offsets = [0, 0], sizes = [8, 32], strides = [1, 1]} : vector<8x128xf32> to vector<8x32xf32>
    %127 = vector.extract_strided_slice %125 {offsets = [0, 32], sizes = [8, 32], strides = [1, 1]} : vector<8x128xf32> to vector<8x32xf32>
    %128 = vector.extract_strided_slice %125 {offsets = [0, 64], sizes = [8, 32], strides = [1, 1]} : vector<8x128xf32> to vector<8x32xf32>
    %129 = vector.extract_strided_slice %125 {offsets = [0, 96], sizes = [8, 32], strides = [1, 1]} : vector<8x128xf32> to vector<8x32xf32>
    %130 = arith.mulf %127, %90 : vector<8x32xf32>
    %131 = arith.mulf %126, %128 : vector<8x32xf32>
    %132 = arith.addf %130, %131 : vector<8x32xf32>
    %133 = math.tanh %132 : vector<8x32xf32>
    %134 = arith.mulf %129, %133 : vector<8x32xf32>
    %135 = arith.truncf %134 : vector<8x32xf32> to vector<8x32xbf16>
    %cst_27 = arith.constant dense<0.000000e+00> : vector<8x128xf32>
    %136 = tpu.matmul %135, %16, %cst_27 {dimension_numbers = #tpu.dot_dimension_numbers<[1], [0], [0], [1], [0, 0, 1, 1], [], []>} : vector<8x32xbf16>, vector<32x128xbf16>, vector<8x128xf32> -> vector<8x128xf32>
    %137 = arith.truncf %115 : vector<8x32xf32> to vector<8x32xbf16>
    %cst_28 = arith.constant dense<0.000000e+00> : vector<8x128xf32>
    %138 = tpu.matmul %137, %18, %cst_28 {dimension_numbers = #tpu.dot_dimension_numbers<[1], [0], [0], [1], [0, 0, 1, 1], [], []>} : vector<8x32xbf16>, vector<32x128xbf16>, vector<8x128xf32> -> vector<8x128xf32>
    %139 = arith.addf %136, %138 : vector<8x128xf32>
    %140 = vector.broadcast %20 : vector<1x128xf32> to vector<8x128xf32>
    %141 = arith.addf %139, %140 : vector<8x128xf32>
    %142 = vector.broadcast %8 : vector<1x128xf32> to vector<8x128xf32>
    %143 = arith.mulf %141, %142 : vector<8x128xf32>
    %144 = math.tanh %143 : vector<8x128xf32>
    %145 = vector.broadcast %8 : vector<1x128xf32> to vector<8x128xf32>
    %146 = arith.mulf %144, %145 : vector<8x128xf32>
    %147 = vector.broadcast %11 : vector<1x128xf32> to vector<8x128xf32>
    %148 = arith.addf %146, %147 : vector<8x128xf32>
    %149 = vector.extract_strided_slice %148 {offsets = [0, 0], sizes = [8, 32], strides = [1, 1]} : vector<8x128xf32> to vector<8x32xf32>
    %150 = vector.extract_strided_slice %148 {offsets = [0, 32], sizes = [8, 32], strides = [1, 1]} : vector<8x128xf32> to vector<8x32xf32>
    %151 = vector.extract_strided_slice %148 {offsets = [0, 64], sizes = [8, 32], strides = [1, 1]} : vector<8x128xf32> to vector<8x32xf32>
    %152 = vector.extract_strided_slice %148 {offsets = [0, 96], sizes = [8, 32], strides = [1, 1]} : vector<8x128xf32> to vector<8x32xf32>
    %153 = arith.mulf %150, %113 : vector<8x32xf32>
    %154 = arith.mulf %149, %151 : vector<8x32xf32>
    %155 = arith.addf %153, %154 : vector<8x32xf32>
    %156 = math.tanh %155 : vector<8x32xf32>
    %157 = arith.mulf %152, %156 : vector<8x32xf32>
    %158 = arith.truncf %134 : vector<8x32xf32> to vector<8x32xbf16>
    %cst_29 = arith.constant dense<0.000000e+00> : vector<8x128xf32>
    %159 = tpu.matmul %158, %14, %cst_29 {dimension_numbers = #tpu.dot_dimension_numbers<[1], [0], [0], [1], [0, 0, 1, 1], [], []>} : vector<8x32xbf16>, vector<32x128xbf16>, vector<8x128xf32> -> vector<8x128xf32>
    %160 = arith.addf %39, %159 : vector<8x128xf32>
    %161 = vector.broadcast %8 : vector<1x128xf32> to vector<8x128xf32>
    %162 = arith.mulf %160, %161 : vector<8x128xf32>
    %163 = math.tanh %162 : vector<8x128xf32>
    %164 = vector.broadcast %8 : vector<1x128xf32> to vector<8x128xf32>
    %165 = arith.mulf %163, %164 : vector<8x128xf32>
    %166 = vector.broadcast %11 : vector<1x128xf32> to vector<8x128xf32>
    %167 = arith.addf %165, %166 : vector<8x128xf32>
    %168 = vector.extract_strided_slice %167 {offsets = [0, 0], sizes = [8, 32], strides = [1, 1]} : vector<8x128xf32> to vector<8x32xf32>
    %169 = vector.extract_strided_slice %167 {offsets = [0, 32], sizes = [8, 32], strides = [1, 1]} : vector<8x128xf32> to vector<8x32xf32>
    %170 = vector.extract_strided_slice %167 {offsets = [0, 64], sizes = [8, 32], strides = [1, 1]} : vector<8x128xf32> to vector<8x32xf32>
    %171 = vector.extract_strided_slice %167 {offsets = [0, 96], sizes = [8, 32], strides = [1, 1]} : vector<8x128xf32> to vector<8x32xf32>
    %172 = arith.mulf %169, %132 : vector<8x32xf32>
    %173 = arith.mulf %168, %170 : vector<8x32xf32>
    %174 = arith.addf %172, %173 : vector<8x32xf32>
    %175 = math.tanh %174 : vector<8x32xf32>
    %176 = arith.mulf %171, %175 : vector<8x32xf32>
    %177 = arith.truncf %176 : vector<8x32xf32> to vector<8x32xbf16>
    %cst_30 = arith.constant dense<0.000000e+00> : vector<8x128xf32>
    %178 = tpu.matmul %177, %16, %cst_30 {dimension_numbers = #tpu.dot_dimension_numbers<[1], [0], [0], [1], [0, 0, 1, 1], [], []>} : vector<8x32xbf16>, vector<32x128xbf16>, vector<8x128xf32> -> vector<8x128xf32>
    %179 = arith.truncf %157 : vector<8x32xf32> to vector<8x32xbf16>
    %cst_31 = arith.constant dense<0.000000e+00> : vector<8x128xf32>
    %180 = tpu.matmul %179, %18, %cst_31 {dimension_numbers = #tpu.dot_dimension_numbers<[1], [0], [0], [1], [0, 0, 1, 1], [], []>} : vector<8x32xbf16>, vector<32x128xbf16>, vector<8x128xf32> -> vector<8x128xf32>
    %181 = arith.addf %178, %180 : vector<8x128xf32>
    %182 = vector.broadcast %20 : vector<1x128xf32> to vector<8x128xf32>
    %183 = arith.addf %181, %182 : vector<8x128xf32>
    %184 = vector.broadcast %8 : vector<1x128xf32> to vector<8x128xf32>
    %185 = arith.mulf %183, %184 : vector<8x128xf32>
    %186 = math.tanh %185 : vector<8x128xf32>
    %187 = vector.broadcast %8 : vector<1x128xf32> to vector<8x128xf32>
    %188 = arith.mulf %186, %187 : vector<8x128xf32>
    %189 = vector.broadcast %11 : vector<1x128xf32> to vector<8x128xf32>
    %190 = arith.addf %188, %189 : vector<8x128xf32>
    %191 = vector.extract_strided_slice %190 {offsets = [0, 0], sizes = [8, 32], strides = [1, 1]} : vector<8x128xf32> to vector<8x32xf32>
    %192 = vector.extract_strided_slice %190 {offsets = [0, 32], sizes = [8, 32], strides = [1, 1]} : vector<8x128xf32> to vector<8x32xf32>
    %193 = vector.extract_strided_slice %190 {offsets = [0, 64], sizes = [8, 32], strides = [1, 1]} : vector<8x128xf32> to vector<8x32xf32>
    %194 = vector.extract_strided_slice %190 {offsets = [0, 96], sizes = [8, 32], strides = [1, 1]} : vector<8x128xf32> to vector<8x32xf32>
    %195 = arith.mulf %192, %155 : vector<8x32xf32>
    %196 = arith.mulf %191, %193 : vector<8x32xf32>
    %197 = arith.addf %195, %196 : vector<8x32xf32>
    %198 = math.tanh %197 : vector<8x32xf32>
    %199 = arith.mulf %194, %198 : vector<8x32xf32>
    %200 = arith.truncf %176 : vector<8x32xf32> to vector<8x32xbf16>
    %cst_32 = arith.constant dense<0.000000e+00> : vector<8x128xf32>
    %201 = tpu.matmul %200, %14, %cst_32 {dimension_numbers = #tpu.dot_dimension_numbers<[1], [0], [0], [1], [0, 0, 1, 1], [], []>} : vector<8x32xbf16>, vector<32x128xbf16>, vector<8x128xf32> -> vector<8x128xf32>
    %202 = arith.addf %45, %201 : vector<8x128xf32>
    %203 = vector.broadcast %8 : vector<1x128xf32> to vector<8x128xf32>
    %204 = arith.mulf %202, %203 : vector<8x128xf32>
    %205 = math.tanh %204 : vector<8x128xf32>
    %206 = vector.broadcast %8 : vector<1x128xf32> to vector<8x128xf32>
    %207 = arith.mulf %205, %206 : vector<8x128xf32>
    %208 = vector.broadcast %11 : vector<1x128xf32> to vector<8x128xf32>
    %209 = arith.addf %207, %208 : vector<8x128xf32>
    %210 = vector.extract_strided_slice %209 {offsets = [0, 0], sizes = [8, 32], strides = [1, 1]} : vector<8x128xf32> to vector<8x32xf32>
    %211 = vector.extract_strided_slice %209 {offsets = [0, 32], sizes = [8, 32], strides = [1, 1]} : vector<8x128xf32> to vector<8x32xf32>
    %212 = vector.extract_strided_slice %209 {offsets = [0, 64], sizes = [8, 32], strides = [1, 1]} : vector<8x128xf32> to vector<8x32xf32>
    %213 = vector.extract_strided_slice %209 {offsets = [0, 96], sizes = [8, 32], strides = [1, 1]} : vector<8x128xf32> to vector<8x32xf32>
    %214 = arith.mulf %211, %174 : vector<8x32xf32>
    %215 = arith.mulf %210, %212 : vector<8x32xf32>
    %216 = arith.addf %214, %215 : vector<8x32xf32>
    %217 = math.tanh %216 : vector<8x32xf32>
    %218 = arith.mulf %213, %217 : vector<8x32xf32>
    %219 = arith.truncf %218 : vector<8x32xf32> to vector<8x32xbf16>
    %cst_33 = arith.constant dense<0.000000e+00> : vector<8x128xf32>
    %220 = tpu.matmul %219, %16, %cst_33 {dimension_numbers = #tpu.dot_dimension_numbers<[1], [0], [0], [1], [0, 0, 1, 1], [], []>} : vector<8x32xbf16>, vector<32x128xbf16>, vector<8x128xf32> -> vector<8x128xf32>
    %221 = arith.truncf %199 : vector<8x32xf32> to vector<8x32xbf16>
    %cst_34 = arith.constant dense<0.000000e+00> : vector<8x128xf32>
    %222 = tpu.matmul %221, %18, %cst_34 {dimension_numbers = #tpu.dot_dimension_numbers<[1], [0], [0], [1], [0, 0, 1, 1], [], []>} : vector<8x32xbf16>, vector<32x128xbf16>, vector<8x128xf32> -> vector<8x128xf32>
    %223 = arith.addf %220, %222 : vector<8x128xf32>
    %224 = vector.broadcast %20 : vector<1x128xf32> to vector<8x128xf32>
    %225 = arith.addf %223, %224 : vector<8x128xf32>
    %226 = vector.broadcast %8 : vector<1x128xf32> to vector<8x128xf32>
    %227 = arith.mulf %225, %226 : vector<8x128xf32>
    %228 = math.tanh %227 : vector<8x128xf32>
    %229 = vector.broadcast %8 : vector<1x128xf32> to vector<8x128xf32>
    %230 = arith.mulf %228, %229 : vector<8x128xf32>
    %231 = vector.broadcast %11 : vector<1x128xf32> to vector<8x128xf32>
    %232 = arith.addf %230, %231 : vector<8x128xf32>
    %233 = vector.extract_strided_slice %232 {offsets = [0, 0], sizes = [8, 32], strides = [1, 1]} : vector<8x128xf32> to vector<8x32xf32>
    %234 = vector.extract_strided_slice %232 {offsets = [0, 32], sizes = [8, 32], strides = [1, 1]} : vector<8x128xf32> to vector<8x32xf32>
    %235 = vector.extract_strided_slice %232 {offsets = [0, 64], sizes = [8, 32], strides = [1, 1]} : vector<8x128xf32> to vector<8x32xf32>
    %236 = vector.extract_strided_slice %232 {offsets = [0, 96], sizes = [8, 32], strides = [1, 1]} : vector<8x128xf32> to vector<8x32xf32>
    %237 = arith.mulf %234, %197 : vector<8x32xf32>
    %238 = arith.mulf %233, %235 : vector<8x32xf32>
    %239 = arith.addf %237, %238 : vector<8x32xf32>
    %240 = math.tanh %239 : vector<8x32xf32>
    %241 = arith.mulf %236, %240 : vector<8x32xf32>
    %242 = arith.truncf %218 : vector<8x32xf32> to vector<8x32xbf16>
    %cst_35 = arith.constant dense<0.000000e+00> : vector<8x128xf32>
    %243 = tpu.matmul %242, %14, %cst_35 {dimension_numbers = #tpu.dot_dimension_numbers<[1], [0], [0], [1], [0, 0, 1, 1], [], []>} : vector<8x32xbf16>, vector<32x128xbf16>, vector<8x128xf32> -> vector<8x128xf32>
    %244 = arith.addf %51, %243 : vector<8x128xf32>
    %245 = vector.broadcast %8 : vector<1x128xf32> to vector<8x128xf32>
    %246 = arith.mulf %244, %245 : vector<8x128xf32>
    %247 = math.tanh %246 : vector<8x128xf32>
    %248 = vector.broadcast %8 : vector<1x128xf32> to vector<8x128xf32>
    %249 = arith.mulf %247, %248 : vector<8x128xf32>
    %250 = vector.broadcast %11 : vector<1x128xf32> to vector<8x128xf32>
    %251 = arith.addf %249, %250 : vector<8x128xf32>
    %252 = vector.extract_strided_slice %251 {offsets = [0, 0], sizes = [8, 32], strides = [1, 1]} : vector<8x128xf32> to vector<8x32xf32>
    %253 = vector.extract_strided_slice %251 {offsets = [0, 32], sizes = [8, 32], strides = [1, 1]} : vector<8x128xf32> to vector<8x32xf32>
    %254 = vector.extract_strided_slice %251 {offsets = [0, 64], sizes = [8, 32], strides = [1, 1]} : vector<8x128xf32> to vector<8x32xf32>
    %255 = vector.extract_strided_slice %251 {offsets = [0, 96], sizes = [8, 32], strides = [1, 1]} : vector<8x128xf32> to vector<8x32xf32>
    %256 = arith.mulf %253, %216 : vector<8x32xf32>
    %257 = arith.mulf %252, %254 : vector<8x32xf32>
    %258 = arith.addf %256, %257 : vector<8x32xf32>
    %259 = math.tanh %258 : vector<8x32xf32>
    %260 = arith.mulf %255, %259 : vector<8x32xf32>
    %261 = arith.truncf %260 : vector<8x32xf32> to vector<8x32xbf16>
    %cst_36 = arith.constant dense<0.000000e+00> : vector<8x128xf32>
    %262 = tpu.matmul %261, %16, %cst_36 {dimension_numbers = #tpu.dot_dimension_numbers<[1], [0], [0], [1], [0, 0, 1, 1], [], []>} : vector<8x32xbf16>, vector<32x128xbf16>, vector<8x128xf32> -> vector<8x128xf32>
    %263 = arith.truncf %241 : vector<8x32xf32> to vector<8x32xbf16>
    %cst_37 = arith.constant dense<0.000000e+00> : vector<8x128xf32>
    %264 = tpu.matmul %263, %18, %cst_37 {dimension_numbers = #tpu.dot_dimension_numbers<[1], [0], [0], [1], [0, 0, 1, 1], [], []>} : vector<8x32xbf16>, vector<32x128xbf16>, vector<8x128xf32> -> vector<8x128xf32>
    %265 = arith.addf %262, %264 : vector<8x128xf32>
    %266 = vector.broadcast %20 : vector<1x128xf32> to vector<8x128xf32>
    %267 = arith.addf %265, %266 : vector<8x128xf32>
    %268 = vector.broadcast %8 : vector<1x128xf32> to vector<8x128xf32>
    %269 = arith.mulf %267, %268 : vector<8x128xf32>
    %270 = math.tanh %269 : vector<8x128xf32>
    %271 = vector.broadcast %8 : vector<1x128xf32> to vector<8x128xf32>
    %272 = arith.mulf %270, %271 : vector<8x128xf32>
    %273 = vector.broadcast %11 : vector<1x128xf32> to vector<8x128xf32>
    %274 = arith.addf %272, %273 : vector<8x128xf32>
    %275 = vector.extract_strided_slice %274 {offsets = [0, 0], sizes = [8, 32], strides = [1, 1]} : vector<8x128xf32> to vector<8x32xf32>
    %276 = vector.extract_strided_slice %274 {offsets = [0, 32], sizes = [8, 32], strides = [1, 1]} : vector<8x128xf32> to vector<8x32xf32>
    %277 = vector.extract_strided_slice %274 {offsets = [0, 64], sizes = [8, 32], strides = [1, 1]} : vector<8x128xf32> to vector<8x32xf32>
    %278 = vector.extract_strided_slice %274 {offsets = [0, 96], sizes = [8, 32], strides = [1, 1]} : vector<8x128xf32> to vector<8x32xf32>
    %279 = arith.mulf %276, %239 : vector<8x32xf32>
    %280 = arith.mulf %275, %277 : vector<8x32xf32>
    %281 = arith.addf %279, %280 : vector<8x32xf32>
    %282 = math.tanh %281 : vector<8x32xf32>
    %283 = arith.mulf %278, %282 : vector<8x32xf32>
    %284 = arith.truncf %260 : vector<8x32xf32> to vector<8x32xbf16>
    %cst_38 = arith.constant dense<0.000000e+00> : vector<8x128xf32>
    %285 = tpu.matmul %284, %14, %cst_38 {dimension_numbers = #tpu.dot_dimension_numbers<[1], [0], [0], [1], [0, 0, 1, 1], [], []>} : vector<8x32xbf16>, vector<32x128xbf16>, vector<8x128xf32> -> vector<8x128xf32>
    %286 = arith.addf %57, %285 : vector<8x128xf32>
    %287 = vector.broadcast %8 : vector<1x128xf32> to vector<8x128xf32>
    %288 = arith.mulf %286, %287 : vector<8x128xf32>
    %289 = math.tanh %288 : vector<8x128xf32>
    %290 = vector.broadcast %8 : vector<1x128xf32> to vector<8x128xf32>
    %291 = arith.mulf %289, %290 : vector<8x128xf32>
    %292 = vector.broadcast %11 : vector<1x128xf32> to vector<8x128xf32>
    %293 = arith.addf %291, %292 : vector<8x128xf32>
    %294 = vector.extract_strided_slice %293 {offsets = [0, 0], sizes = [8, 32], strides = [1, 1]} : vector<8x128xf32> to vector<8x32xf32>
    %295 = vector.extract_strided_slice %293 {offsets = [0, 32], sizes = [8, 32], strides = [1, 1]} : vector<8x128xf32> to vector<8x32xf32>
    %296 = vector.extract_strided_slice %293 {offsets = [0, 64], sizes = [8, 32], strides = [1, 1]} : vector<8x128xf32> to vector<8x32xf32>
    %297 = vector.extract_strided_slice %293 {offsets = [0, 96], sizes = [8, 32], strides = [1, 1]} : vector<8x128xf32> to vector<8x32xf32>
    %298 = arith.mulf %295, %258 : vector<8x32xf32>
    %299 = arith.mulf %294, %296 : vector<8x32xf32>
    %300 = arith.addf %298, %299 : vector<8x32xf32>
    %301 = math.tanh %300 : vector<8x32xf32>
    %302 = arith.mulf %297, %301 : vector<8x32xf32>
    %303 = arith.truncf %302 : vector<8x32xf32> to vector<8x32xbf16>
    %cst_39 = arith.constant dense<0.000000e+00> : vector<8x128xf32>
    %304 = tpu.matmul %303, %16, %cst_39 {dimension_numbers = #tpu.dot_dimension_numbers<[1], [0], [0], [1], [0, 0, 1, 1], [], []>} : vector<8x32xbf16>, vector<32x128xbf16>, vector<8x128xf32> -> vector<8x128xf32>
    %305 = arith.truncf %283 : vector<8x32xf32> to vector<8x32xbf16>
    %cst_40 = arith.constant dense<0.000000e+00> : vector<8x128xf32>
    %306 = tpu.matmul %305, %18, %cst_40 {dimension_numbers = #tpu.dot_dimension_numbers<[1], [0], [0], [1], [0, 0, 1, 1], [], []>} : vector<8x32xbf16>, vector<32x128xbf16>, vector<8x128xf32> -> vector<8x128xf32>
    %307 = arith.addf %304, %306 : vector<8x128xf32>
    %308 = vector.broadcast %20 : vector<1x128xf32> to vector<8x128xf32>
    %309 = arith.addf %307, %308 : vector<8x128xf32>
    %310 = vector.broadcast %8 : vector<1x128xf32> to vector<8x128xf32>
    %311 = arith.mulf %309, %310 : vector<8x128xf32>
    %312 = math.tanh %311 : vector<8x128xf32>
    %313 = vector.broadcast %8 : vector<1x128xf32> to vector<8x128xf32>
    %314 = arith.mulf %312, %313 : vector<8x128xf32>
    %315 = vector.broadcast %11 : vector<1x128xf32> to vector<8x128xf32>
    %316 = arith.addf %314, %315 : vector<8x128xf32>
    %317 = vector.extract_strided_slice %316 {offsets = [0, 0], sizes = [8, 32], strides = [1, 1]} : vector<8x128xf32> to vector<8x32xf32>
    %318 = vector.extract_strided_slice %316 {offsets = [0, 32], sizes = [8, 32], strides = [1, 1]} : vector<8x128xf32> to vector<8x32xf32>
    %319 = vector.extract_strided_slice %316 {offsets = [0, 64], sizes = [8, 32], strides = [1, 1]} : vector<8x128xf32> to vector<8x32xf32>
    %320 = vector.extract_strided_slice %316 {offsets = [0, 96], sizes = [8, 32], strides = [1, 1]} : vector<8x128xf32> to vector<8x32xf32>
    %321 = arith.mulf %318, %281 : vector<8x32xf32>
    %322 = arith.mulf %317, %319 : vector<8x32xf32>
    %323 = arith.addf %321, %322 : vector<8x32xf32>
    %324 = math.tanh %323 : vector<8x32xf32>
    %325 = arith.mulf %320, %324 : vector<8x32xf32>
    %326 = arith.truncf %302 : vector<8x32xf32> to vector<8x32xbf16>
    %cst_41 = arith.constant dense<0.000000e+00> : vector<8x128xf32>
    %327 = tpu.matmul %326, %14, %cst_41 {dimension_numbers = #tpu.dot_dimension_numbers<[1], [0], [0], [1], [0, 0, 1, 1], [], []>} : vector<8x32xbf16>, vector<32x128xbf16>, vector<8x128xf32> -> vector<8x128xf32>
    %328 = arith.addf %63, %327 : vector<8x128xf32>
    %329 = vector.broadcast %8 : vector<1x128xf32> to vector<8x128xf32>
    %330 = arith.mulf %328, %329 : vector<8x128xf32>
    %331 = math.tanh %330 : vector<8x128xf32>
    %332 = vector.broadcast %8 : vector<1x128xf32> to vector<8x128xf32>
    %333 = arith.mulf %331, %332 : vector<8x128xf32>
    %334 = vector.broadcast %11 : vector<1x128xf32> to vector<8x128xf32>
    %335 = arith.addf %333, %334 : vector<8x128xf32>
    %336 = vector.extract_strided_slice %335 {offsets = [0, 0], sizes = [8, 32], strides = [1, 1]} : vector<8x128xf32> to vector<8x32xf32>
    %337 = vector.extract_strided_slice %335 {offsets = [0, 32], sizes = [8, 32], strides = [1, 1]} : vector<8x128xf32> to vector<8x32xf32>
    %338 = vector.extract_strided_slice %335 {offsets = [0, 64], sizes = [8, 32], strides = [1, 1]} : vector<8x128xf32> to vector<8x32xf32>
    %339 = vector.extract_strided_slice %335 {offsets = [0, 96], sizes = [8, 32], strides = [1, 1]} : vector<8x128xf32> to vector<8x32xf32>
    %340 = arith.mulf %337, %300 : vector<8x32xf32>
    %341 = arith.mulf %336, %338 : vector<8x32xf32>
    %342 = arith.addf %340, %341 : vector<8x32xf32>
    %343 = math.tanh %342 : vector<8x32xf32>
    %344 = arith.mulf %339, %343 : vector<8x32xf32>
    %345 = arith.truncf %344 : vector<8x32xf32> to vector<8x32xbf16>
    %cst_42 = arith.constant dense<0.000000e+00> : vector<8x128xf32>
    %346 = tpu.matmul %345, %16, %cst_42 {dimension_numbers = #tpu.dot_dimension_numbers<[1], [0], [0], [1], [0, 0, 1, 1], [], []>} : vector<8x32xbf16>, vector<32x128xbf16>, vector<8x128xf32> -> vector<8x128xf32>
    %347 = arith.truncf %325 : vector<8x32xf32> to vector<8x32xbf16>
    %cst_43 = arith.constant dense<0.000000e+00> : vector<8x128xf32>
    %348 = tpu.matmul %347, %18, %cst_43 {dimension_numbers = #tpu.dot_dimension_numbers<[1], [0], [0], [1], [0, 0, 1, 1], [], []>} : vector<8x32xbf16>, vector<32x128xbf16>, vector<8x128xf32> -> vector<8x128xf32>
    %349 = arith.addf %346, %348 : vector<8x128xf32>
    %350 = vector.broadcast %20 : vector<1x128xf32> to vector<8x128xf32>
    %351 = arith.addf %349, %350 : vector<8x128xf32>
    %352 = vector.broadcast %8 : vector<1x128xf32> to vector<8x128xf32>
    %353 = arith.mulf %351, %352 : vector<8x128xf32>
    %354 = math.tanh %353 : vector<8x128xf32>
    %355 = vector.broadcast %8 : vector<1x128xf32> to vector<8x128xf32>
    %356 = arith.mulf %354, %355 : vector<8x128xf32>
    %357 = vector.broadcast %11 : vector<1x128xf32> to vector<8x128xf32>
    %358 = arith.addf %356, %357 : vector<8x128xf32>
    %359 = vector.extract_strided_slice %358 {offsets = [0, 0], sizes = [8, 32], strides = [1, 1]} : vector<8x128xf32> to vector<8x32xf32>
    %360 = vector.extract_strided_slice %358 {offsets = [0, 32], sizes = [8, 32], strides = [1, 1]} : vector<8x128xf32> to vector<8x32xf32>
    %361 = vector.extract_strided_slice %358 {offsets = [0, 64], sizes = [8, 32], strides = [1, 1]} : vector<8x128xf32> to vector<8x32xf32>
    %362 = vector.extract_strided_slice %358 {offsets = [0, 96], sizes = [8, 32], strides = [1, 1]} : vector<8x128xf32> to vector<8x32xf32>
    %363 = arith.mulf %360, %323 : vector<8x32xf32>
    %364 = arith.mulf %359, %361 : vector<8x32xf32>
    %365 = arith.addf %363, %364 : vector<8x32xf32>
    %366 = math.tanh %365 : vector<8x32xf32>
    %367 = arith.mulf %362, %366 : vector<8x32xf32>
    %368 = arith.truncf %344 : vector<8x32xf32> to vector<8x32xbf16>
    %cst_44 = arith.constant dense<0.000000e+00> : vector<8x128xf32>
    %369 = tpu.matmul %368, %14, %cst_44 {dimension_numbers = #tpu.dot_dimension_numbers<[1], [0], [0], [1], [0, 0, 1, 1], [], []>} : vector<8x32xbf16>, vector<32x128xbf16>, vector<8x128xf32> -> vector<8x128xf32>
    %370 = arith.addf %69, %369 : vector<8x128xf32>
    %371 = vector.broadcast %8 : vector<1x128xf32> to vector<8x128xf32>
    %372 = arith.mulf %370, %371 : vector<8x128xf32>
    %373 = math.tanh %372 : vector<8x128xf32>
    %374 = vector.broadcast %8 : vector<1x128xf32> to vector<8x128xf32>
    %375 = arith.mulf %373, %374 : vector<8x128xf32>
    %376 = vector.broadcast %11 : vector<1x128xf32> to vector<8x128xf32>
    %377 = arith.addf %375, %376 : vector<8x128xf32>
    %378 = vector.extract_strided_slice %377 {offsets = [0, 0], sizes = [8, 32], strides = [1, 1]} : vector<8x128xf32> to vector<8x32xf32>
    %379 = vector.extract_strided_slice %377 {offsets = [0, 32], sizes = [8, 32], strides = [1, 1]} : vector<8x128xf32> to vector<8x32xf32>
    %380 = vector.extract_strided_slice %377 {offsets = [0, 64], sizes = [8, 32], strides = [1, 1]} : vector<8x128xf32> to vector<8x32xf32>
    %381 = vector.extract_strided_slice %377 {offsets = [0, 96], sizes = [8, 32], strides = [1, 1]} : vector<8x128xf32> to vector<8x32xf32>
    %382 = arith.mulf %379, %342 : vector<8x32xf32>
    %383 = arith.mulf %378, %380 : vector<8x32xf32>
    %384 = arith.addf %382, %383 : vector<8x32xf32>
    %385 = math.tanh %384 : vector<8x32xf32>
    %386 = arith.mulf %381, %385 : vector<8x32xf32>
    %387 = arith.truncf %386 : vector<8x32xf32> to vector<8x32xbf16>
    %cst_45 = arith.constant dense<0.000000e+00> : vector<8x128xf32>
    %388 = tpu.matmul %387, %16, %cst_45 {dimension_numbers = #tpu.dot_dimension_numbers<[1], [0], [0], [1], [0, 0, 1, 1], [], []>} : vector<8x32xbf16>, vector<32x128xbf16>, vector<8x128xf32> -> vector<8x128xf32>
    %389 = arith.truncf %367 : vector<8x32xf32> to vector<8x32xbf16>
    %cst_46 = arith.constant dense<0.000000e+00> : vector<8x128xf32>
    %390 = tpu.matmul %389, %18, %cst_46 {dimension_numbers = #tpu.dot_dimension_numbers<[1], [0], [0], [1], [0, 0, 1, 1], [], []>} : vector<8x32xbf16>, vector<32x128xbf16>, vector<8x128xf32> -> vector<8x128xf32>
    %391 = arith.addf %388, %390 : vector<8x128xf32>
    %392 = vector.broadcast %20 : vector<1x128xf32> to vector<8x128xf32>
    %393 = arith.addf %391, %392 : vector<8x128xf32>
    %394 = vector.broadcast %8 : vector<1x128xf32> to vector<8x128xf32>
    %395 = arith.mulf %393, %394 : vector<8x128xf32>
    %396 = math.tanh %395 : vector<8x128xf32>
    %397 = vector.broadcast %8 : vector<1x128xf32> to vector<8x128xf32>
    %398 = arith.mulf %396, %397 : vector<8x128xf32>
    %399 = vector.broadcast %11 : vector<1x128xf32> to vector<8x128xf32>
    %400 = arith.addf %398, %399 : vector<8x128xf32>
    %401 = vector.extract_strided_slice %400 {offsets = [0, 0], sizes = [8, 32], strides = [1, 1]} : vector<8x128xf32> to vector<8x32xf32>
    %402 = vector.extract_strided_slice %400 {offsets = [0, 32], sizes = [8, 32], strides = [1, 1]} : vector<8x128xf32> to vector<8x32xf32>
    %403 = vector.extract_strided_slice %400 {offsets = [0, 64], sizes = [8, 32], strides = [1, 1]} : vector<8x128xf32> to vector<8x32xf32>
    %404 = vector.extract_strided_slice %400 {offsets = [0, 96], sizes = [8, 32], strides = [1, 1]} : vector<8x128xf32> to vector<8x32xf32>
    %405 = arith.mulf %402, %365 : vector<8x32xf32>
    %406 = arith.mulf %401, %403 : vector<8x32xf32>
    %407 = arith.addf %405, %406 : vector<8x32xf32>
    %408 = math.tanh %407 : vector<8x32xf32>
    %409 = arith.mulf %404, %408 : vector<8x32xf32>
    %410 = arith.truncf %409 : vector<8x32xf32> to vector<8x32xbf16>
    %c0_47 = arith.constant 0 : index
    %c0_48 = arith.constant 0 : index
    %411 = vector.load %arg8[%c0_47, %c0_48] : memref<32x4xbf16, #tpu.memory_space<vmem>>, vector<32x4xbf16>
    %cst_49 = arith.constant dense<0.000000e+00> : vector<8x4xf32>
    %412 = tpu.matmul %410, %411, %cst_49 {dimension_numbers = #tpu.dot_dimension_numbers<[1], [0], [0], [1], [0, 0, 1, 1], [], []>} : vector<8x32xbf16>, vector<32x4xbf16>, vector<8x4xf32> -> vector<8x4xf32>
    %c0_50 = arith.constant 0 : index
    %c0_51 = arith.constant 0 : index
    %413 = vector.load %arg9[%c0_50, %c0_51] : memref<1x4xf32, #tpu.memory_space<vmem>>, vector<1x4xf32>
    %414 = vector.broadcast %413 : vector<1x4xf32> to vector<8x4xf32>
    %415 = arith.addf %412, %414 : vector<8x4xf32>
    %c0_52 = arith.constant 0 : index
    %c0_53 = arith.constant 0 : index
    %416 = vector.load %arg10[%c0_52, %c0_53] : memref<8x4xf32, #tpu.memory_space<vmem>>, vector<8x4xf32>
    tpu.vector_store %arg10[%c0_52, %c0_53], %415 {strides = array<i32>} : memref<8x4xf32, #tpu.memory_space<vmem>>, vector<8x4xf32>,
    return
  }
  func.func @transform_0(%arg0: i32) -> (i32, i32) {
    %c0_i32 = arith.constant 0 : i32
    %c0_i32_0 = arith.constant 0 : i32
    return %arg0, %c0_i32 : i32, i32
  }
  func.func @transform_1(%arg0: i32) -> (i32, i32) {
    %c0_i32 = arith.constant 0 : i32
    %c0_i32_0 = arith.constant 0 : i32
    %c0_i32_1 = arith.constant 0 : i32
    return %c0_i32, %c0_i32_0 : i32, i32
  }
  func.func @transform_2(%arg0: i32) -> (i32, i32) {
    %c0_i32 = arith.constant 0 : i32
    %c0_i32_0 = arith.constant 0 : i32
    %c0_i32_1 = arith.constant 0 : i32
    return %c0_i32, %c0_i32_0 : i32, i32
  }
  func.func @transform_3(%arg0: i32) -> (i32, i32) {
    %c0_i32 = arith.constant 0 : i32
    %c0_i32_0 = arith.constant 0 : i32
    %c0_i32_1 = arith.constant 0 : i32
    return %c0_i32, %c0_i32_0 : i32, i32
  }
  func.func @transform_4(%arg0: i32) -> (i32, i32, i32) {
    %c0_i32 = arith.constant 0 : i32
    %c0_i32_0 = arith.constant 0 : i32
    %c0_i32_1 = arith.constant 0 : i32
    %c0_i32_2 = arith.constant 0 : i32
    return %c0_i32, %c0_i32_0, %c0_i32_1 : i32, i32, i32
  }
  func.func @transform_5(%arg0: i32) -> (i32, i32, i32) {
    %c0_i32 = arith.constant 0 : i32
    %c0_i32_0 = arith.constant 0 : i32
    %c0_i32_1 = arith.constant 0 : i32
    %c0_i32_2 = arith.constant 0 : i32
    return %c0_i32, %c0_i32_0, %c0_i32_1 : i32, i32, i32
  }
  func.func @transform_6(%arg0: i32) -> (i32, i32, i32) {
    %c0_i32 = arith.constant 0 : i32
    %c0_i32_0 = arith.constant 0 : i32
    %c0_i32_1 = arith.constant 0 : i32
    %c0_i32_2 = arith.constant 0 : i32
    return %c0_i32, %c0_i32_0, %c0_i32_1 : i32, i32, i32
  }
  func.func @transform_7(%arg0: i32) -> (i32, i32) {
    %c0_i32 = arith.constant 0 : i32
    %c0_i32_0 = arith.constant 0 : i32
    %c0_i32_1 = arith.constant 0 : i32
    return %c0_i32, %c0_i32_0 : i32, i32
  }
  func.func @transform_8(%arg0: i32) -> (i32, i32) {
    %c0_i32 = arith.constant 0 : i32
    %c0_i32_0 = arith.constant 0 : i32
    %c0_i32_1 = arith.constant 0 : i32
    return %c0_i32, %c0_i32_0 : i32, i32
  }
  func.func @transform_9(%arg0: i32) -> (i32, i32) {
    %c0_i32 = arith.constant 0 : i32
    %c0_i32_0 = arith.constant 0 : i32
    return %arg0, %c0_i32 : i32, i32
  }
}

</mosaic_0001>

<llo_original>
// kernel: fbf_lstm_forward.1
$region0: #{fbf_lstm_forward.1}
  #allocation0 [shape = 'u32[]', space=smem, size = 0x4, offset = 0x4, fixed_abs, tag = 'smem constant byte address 0x4 - core index']
  #allocation1 [shape = 'u32[72,128]{1,0:T(1,128)}', space=vmem, size = 0x9000, scoped, tag = 'internal scratch']
  %s0 = inlined_call_operand.vmem [shape: f32[8,8], index: 0, kind: input, shape index: {}]
  %s1 = inlined_call_operand.vmem [shape: f32[1,128], index: 1, kind: input, shape index: {}]
  %s2 = inlined_call_operand.vmem [shape: bf16[32,128], index: 2, kind: input, shape index: {}]
  %s3 = inlined_call_operand.vmem [shape: f32[1,128], index: 3, kind: input, shape index: {}]
  %s4 = inlined_call_operand.vmem [shape: bf16[1,32,128], index: 4, kind: input, shape index: {}]
  %s5 = inlined_call_operand.vmem [shape: bf16[1,32,128], index: 5, kind: input, shape index: {}]
  %s6 = inlined_call_operand.vmem [shape: f32[1,1,128], index: 6, kind: input, shape index: {}]
  %s7 = inlined_call_operand.vmem [shape: bf16[32,4], index: 7, kind: input, shape index: {}]
  %s8 = inlined_call_operand.vmem [shape: f32[1,4], index: 8, kind: input, shape index: {}]
  %s9 = inlined_call_operand.vmem [shape: f32[8,4], index: 9, kind: output, shape index: {}]
  %s10 = sld [smem:[#allocation0]]
  $region46: #{fbf_lstm_forward.1} parent=0
    _
  %s12 = ssub.s32 1, %s10
  %s13 = scalar_select 0, %s12, %s10
  // Predicated region
  $region2: #{fbf_lstm_forward.1} parent=0 // pred_check
    _
  $region3: #{fbf_lstm_forward.1} parent=0 // pred_check_branch
    %15 = sbr.rel (0) target = $region5
  $region4: #{fbf_lstm_forward.1} parent=0 // pred_region
    _
  $region5: #{fbf_lstm_forward.1} parent=0 // pred_fallthru
    _
  // Predicated region
  $region6: #{fbf_lstm_forward.1} parent=0 // pred_check
    _
  $region7: #{fbf_lstm_forward.1} parent=0 // pred_check_branch
    %17 = sbr.rel (0) target = $region9
  $region8: #{fbf_lstm_forward.1} parent=0 // pred_region
    _
  $region9: #{fbf_lstm_forward.1} parent=0 // pred_fallthru
    _
  // Predicated region
  $region10: #{fbf_lstm_forward.1} parent=0 // pred_check
    _
  $region11: #{fbf_lstm_forward.1} parent=0 // pred_check_branch
    %19 = sbr.rel (0) target = $region13
  $region12: #{fbf_lstm_forward.1} parent=0 // pred_region
    _
  $region13: #{fbf_lstm_forward.1} parent=0 // pred_fallthru
    _
  // Predicated region
  $region14: #{fbf_lstm_forward.1} parent=0 // pred_check
    _
  $region15: #{fbf_lstm_forward.1} parent=0 // pred_check_branch
    %21 = sbr.rel (0) target = $region17
  $region16: #{fbf_lstm_forward.1} parent=0 // pred_region
    _
  $region17: #{fbf_lstm_forward.1} parent=0 // pred_fallthru
    _
  // Predicated region
  $region18: #{fbf_lstm_forward.1} parent=0 // pred_check
    _
  $region19: #{fbf_lstm_forward.1} parent=0 // pred_check_branch
    %23 = sbr.rel (0) target = $region21
  $region20: #{fbf_lstm_forward.1} parent=0 // pred_region
    _
  $region21: #{fbf_lstm_forward.1} parent=0 // pred_fallthru
    _
  // Predicated region
  $region22: #{fbf_lstm_forward.1} parent=0 // pred_check
    _
  $region23: #{fbf_lstm_forward.1} parent=0 // pred_check_branch
    %25 = sbr.rel (0) target = $region25
  $region24: #{fbf_lstm_forward.1} parent=0 // pred_region
    _
  $region25: #{fbf_lstm_forward.1} parent=0 // pred_fallthru
    _
  // Predicated region
  $region26: #{fbf_lstm_forward.1} parent=0 // pred_check
    _
  $region27: #{fbf_lstm_forward.1} parent=0 // pred_check_branch
    %27 = sbr.rel (0) target = $region29
  $region28: #{fbf_lstm_forward.1} parent=0 // pred_region
    _
  $region29: #{fbf_lstm_forward.1} parent=0 // pred_fallthru
    _
  // Predicated region
  $region30: #{fbf_lstm_forward.1} parent=0 // pred_check
    _
  $region31: #{fbf_lstm_forward.1} parent=0 // pred_check_branch
    %29 = sbr.rel (0) target = $region33
  $region32: #{fbf_lstm_forward.1} parent=0 // pred_region
    _
  $region33: #{fbf_lstm_forward.1} parent=0 // pred_fallthru
    _
  // Predicated region
  $region34: #{fbf_lstm_forward.1} parent=0 // pred_check
    _
  $region35: #{fbf_lstm_forward.1} parent=0 // pred_check_branch
    %31 = sbr.rel (0) target = $region37
  $region36: #{fbf_lstm_forward.1} parent=0 // pred_region
    _
  $region37: #{fbf_lstm_forward.1} parent=0 // pred_fallthru
    _
  %v33 = vlaneseq
  %v34 = vand.u32 %v33, 127
  %vm35 = vcmp.ge.s32.totalorder %v34, 64
  %vm36 = vcmp.lt.s32.totalorder %v34, 96
  %vm37 = vmand %vm35, %vm36
  %v38 = vsel %vm37, 1.0, 0.5
  %v39 = vsel %vm37, 0.0, 0.5
  %v40 = vld [vmem:[%s1] sm:$0x1]
  %v41 = vld [vmem:[%s3] sm:$0x1]
  %v42 = vld [vmem:[%s2] sm:$0xf]
  %v43 = vld [vmem:[%s2 + $0x4] sm:$0xf]
  %v44 = vld [vmem:[%s2 + $0x8] sm:$0xf]
  %v45 = vld [vmem:[%s2 + $0xc] sm:$0xf]
  %v46 = vld [vmem:[%s4] sm:$0xf]
  %v47 = vld [vmem:[%s4 + $0x4] sm:$0xf]
  %v48 = vld [vmem:[%s4 + $0x8] sm:$0xf]
  %v49 = vld [vmem:[%s4 + $0xc] sm:$0xf]
  %v50 = vld [vmem:[%s5] sm:$0xf]
  %v51 = vld [vmem:[%s5 + $0x4] sm:$0xf]
  %v52 = vld [vmem:[%s5 + $0x8] sm:$0xf]
  %v53 = vld [vmem:[%s5 + $0xc] sm:$0xf]
  %v54 = vld [vmem:[%s6] sm:$0x1]
  %v55 = vld [vmem:[%s0] sm:$0xff]
  %57 = vset.pattern.permute.xlu0 0
  %58 = vperm.xlu0 %57, %v55
  %v59 = vpop.permute.xlu0 %58
  %v62 = vperm.slane %v40, 0
  %v64 = vmul.f32 %v59, %v62
  %v66 = vperm.slane %v41, 0
  %v68 = vadd.f32 %v64, %v66
  %69 = vset.pattern.permute.xlu0 1
  %70 = vperm.xlu0 %69, %v55
  %v71 = vpop.permute.xlu0 %70
  %v73 = vmul.f32 %v71, %v62
  %v74 = vadd.f32 %v73, %v66
  %75 = vset.pattern.permute.xlu0 2
  %76 = vperm.xlu0 %75, %v55
  %v77 = vpop.permute.xlu0 %76
  %v79 = vmul.f32 %v77, %v62
  %v80 = vadd.f32 %v79, %v66
  %81 = vset.pattern.permute.xlu0 3
  %82 = vperm.xlu0 %81, %v55
  %v83 = vpop.permute.xlu0 %82
  %v85 = vmul.f32 %v83, %v62
  %v86 = vadd.f32 %v85, %v66
  %87 = vset.pattern.permute.xlu0 4
  %88 = vperm.xlu0 %87, %v55
  %v89 = vpop.permute.xlu0 %88
  %v91 = vmul.f32 %v89, %v62
  %v92 = vadd.f32 %v91, %v66
  %93 = vset.pattern.permute.xlu0 5
  %94 = vperm.xlu0 %93, %v55
  %v95 = vpop.permute.xlu0 %94
  %v97 = vmul.f32 %v95, %v62
  %v98 = vadd.f32 %v97, %v66
  %99 = vset.pattern.permute.xlu0 6
  %100 = vperm.xlu0 %99, %v55
  %v101 = vpop.permute.xlu0 %100
  %v103 = vmul.f32 %v101, %v62
  %v104 = vadd.f32 %v103, %v66
  %105 = vset.pattern.permute.xlu0 7
  %106 = vperm.xlu0 %105, %v55
  %v107 = vpop.permute.xlu0 %106
  %v109 = vmul.f32 %v107, %v62
  %v110 = vadd.f32 %v109, %v66
  %v115 = vunpack.c.l.b16 %v42
  %v116 = vunpack.c.l.b16 %v43
  %v117 = vunpack.c.l.b16 %v44
  %v118 = vunpack.c.l.b16 %v45
  %v119 = vpack.c.b16 %v116, %v115
  %v120 = vpack.c.b16 %v118, %v117
  %vm123 = vcmask 261120
  %v125 = vsel %vm123, 0, 0
  %127 = vmatpush.bf16.msra.mxu0 0
  %128 = vmatpush.bf16.msra.mxu0 0
  %129 = vmatpush.bf16.msra.mxu0 0
  %130 = vmatpush.bf16.msra.mxu0 0
  %131 = vmatpush.bf16.msra.mxu0 0
  %132 = vmatpush.bf16.msra.mxu0 0
  %133 = vmatpush.bf16.msra.mxu0 %v120
  %134 = vmatpush.bf16.msra.mxu0 %v119
  %135 = vmatmul.bf16.gmra.mxu0 %v125
  %v136 = vpop.f32.mrf.mxu0
  %v137 = vadd.f32 0.0, %v136
  %v138 = vpop.f32.mrf.mxu0
  %139 = vdwg.mxu0
  %v140 = vadd.f32 %v68, %v137
  %v141 = vmul.f32 %v140, %v38
  %v142 = vtanh.pop %v141
  %v143 = vmul.f32 %v142, %v38
  %v144 = vadd.f32 %v143, %v39
  %v145 = vmul.f32 %v144, 0.0
  %147 = vrot.lane.b32.xlu0 %v144, 64
  %v148 = vpop.permute.xlu0 %147
  %v150 = vmul.f32 %v144, %v148
  %152 = vrot.lane.b32.xlu0 %v150, 32
  %v153 = vpop.permute.xlu0 %152
  %v155 = vadd.f32 %v145, %v153
  %v156 = vtanh.pop %v155
  %158 = vrot.lane.b32.xlu0 %v156, 64
  %v159 = vpop.permute.xlu0 %158
  %v161 = vmul.f32 %v144, %v159
  %v162 = vpack.c.bf16 %v161, %v161
  %v167 = vunpack.c.l.b16 %v50
  %v168 = vunpack.c.l.b16 %v51
  %v169 = vunpack.c.l.b16 %v52
  %v170 = vunpack.c.l.b16 %v53
  %v171 = vpack.c.b16 %v168, %v167
  %v172 = vpack.c.b16 %v170, %v169
  %175 = vmatpush.bf16.msra.mxu0 0
  %176 = vmatpush.bf16.msra.mxu0 0
  %177 = vmatpush.bf16.msra.mxu0 0
  %178 = vmatpush.bf16.msra.mxu0 0
  %179 = vmatpush.bf16.msra.mxu0 0
  %180 = vmatpush.bf16.msra.mxu0 0
  %181 = vmatpush.bf16.msra.mxu0 %v172
  %182 = vmatpush.bf16.msra.mxu0 %v171
  %183 = vmatmul.bf16.gmra.mxu0 %v125
  %v184 = vpop.f32.mrf.mxu0
  %v185 = vadd.f32 0.0, %v184
  %v186 = vpop.f32.mrf.mxu0
  %187 = vdwg.mxu0
  %189 = vrot.lane.b32.xlu0 %v162, 32
  %v190 = vpop.permute.xlu0 %189
  %v195 = vunpack.c.l.b16 %v46
  %v196 = vunpack.c.l.b16 %v47
  %v197 = vunpack.c.l.b16 %v48
  %v198 = vunpack.c.l.b16 %v49
  %v199 = vpack.c.b16 %v196, %v195
  %v200 = vpack.c.b16 %v198, %v197
  %v204 = vsel %vm123, %v190, 0
  %206 = vmatpush.bf16.msra.mxu0 0
  %207 = vmatpush.bf16.msra.mxu0 0
  %208 = vmatpush.bf16.msra.mxu0 0
  %209 = vmatpush.bf16.msra.mxu0 0
  %210 = vmatpush.bf16.msra.mxu0 0
  %211 = vmatpush.bf16.msra.mxu0 0
  %212 = vmatpush.bf16.msra.mxu0 %v200
  %213 = vmatpush.bf16.msra.mxu0 %v199
  %214 = vmatmul.bf16.gmra.mxu0 %v204
  %v215 = vpop.f32.mrf.mxu0
  %v216 = vadd.f32 %v185, %v215
  %v217 = vpop.f32.mrf.mxu0
  %218 = vdwg.mxu0
  %v220 = vperm.slane %v54, 0
  %v222 = vadd.f32 %v216, %v220
  %v223 = vmul.f32 %v222, %v38
  %v224 = vtanh.pop %v223
  %v225 = vmul.f32 %v224, %v38
  %v226 = vadd.f32 %v225, %v39
  %v227 = vmul.f32 %v226, 0.0
  %229 = vrot.lane.b32.xlu0 %v226, 64
  %v230 = vpop.permute.xlu0 %229
  %v232 = vmul.f32 %v226, %v230
  %234 = vrot.lane.b32.xlu0 %v232, 32
  %v235 = vpop.permute.xlu0 %234
  %v237 = vadd.f32 %v227, %v235
  %v238 = vtanh.pop %v237
  %240 = vrot.lane.b32.xlu0 %v238, 64
  %v241 = vpop.permute.xlu0 %240
  %v243 = vmul.f32 %v226, %v241
  %244 = vmatpush.bf16.msra.mxu0 0
  %245 = vmatpush.bf16.msra.mxu0 0
  %246 = vmatpush.bf16.msra.mxu0 0
  %247 = vmatpush.bf16.msra.mxu0 0
  %248 = vmatpush.bf16.msra.mxu0 0
  %249 = vmatpush.bf16.msra.mxu0 0
  %250 = vmatpush.bf16.msra.mxu0 %v120
  %251 = vmatpush.bf16.msra.mxu0 %v119
  %252 = vmatmul.bf16.gmra.mxu0 %v204
  %v253 = vpop.f32.mrf.mxu0
  %v254 = vadd.f32 0.0, %v253
  %v255 = vpop.f32.mrf.mxu0
  %256 = vdwg.mxu0
  %v257 = vadd.f32 %v74, %v254
  %v258 = vmul.f32 %v257, %v38
  %v259 = vtanh.pop %v258
  %v260 = vmul.f32 %v259, %v38
  %v261 = vadd.f32 %v260, %v39
  %v262 = vmul.f32 %v261, %v155
  %264 = vrot.lane.b32.xlu0 %v261, 64
  %v265 = vpop.permute.xlu0 %264
  %v267 = vmul.f32 %v261, %v265
  %269 = vrot.lane.b32.xlu0 %v267, 32
  %v270 = vpop.permute.xlu0 %269
  %v272 = vadd.f32 %v262, %v270
  %v273 = vtanh.pop %v272
  %275 = vrot.lane.b32.xlu0 %v273, 64
  %v276 = vpop.permute.xlu0 %275
  %v278 = vmul.f32 %v261, %v276
  %v279 = vpack.c.bf16 %v278, %v278
  %v280 = vpack.c.bf16 %v243, %v243
  %282 = vrot.lane.b32.xlu0 %v280, 32
  %v283 = vpop.permute.xlu0 %282
  %v285 = vsel %vm123, %v283, 0
  %287 = vmatpush.bf16.msra.mxu0 0
  %288 = vmatpush.bf16.msra.mxu0 0
  %289 = vmatpush.bf16.msra.mxu0 0
  %290 = vmatpush.bf16.msra.mxu0 0
  %291 = vmatpush.bf16.msra.mxu0 0
  %292 = vmatpush.bf16.msra.mxu0 0
  %293 = vmatpush.bf16.msra.mxu0 %v172
  %294 = vmatpush.bf16.msra.mxu0 %v171
  %295 = vmatmul.bf16.gmra.mxu0 %v285
  %v296 = vpop.f32.mrf.mxu0
  %v297 = vadd.f32 0.0, %v296
  %v298 = vpop.f32.mrf.mxu0
  %299 = vdwg.mxu0
  %301 = vrot.lane.b32.xlu0 %v279, 32
  %v302 = vpop.permute.xlu0 %301
  %v304 = vsel %vm123, %v302, 0
  %306 = vmatpush.bf16.msra.mxu0 0
  %307 = vmatpush.bf16.msra.mxu0 0
  %308 = vmatpush.bf16.msra.mxu0 0
  %309 = vmatpush.bf16.msra.mxu0 0
  %310 = vmatpush.bf16.msra.mxu0 0
  %311 = vmatpush.bf16.msra.mxu0 0
  %312 = vmatpush.bf16.msra.mxu0 %v200
  %313 = vmatpush.bf16.msra.mxu0 %v199
  %314 = vmatmul.bf16.gmra.mxu0 %v304
  %v315 = vpop.f32.mrf.mxu0
  %v316 = vadd.f32 %v297, %v315
  %v317 = vpop.f32.mrf.mxu0
  %318 = vdwg.mxu0
  %v319 = vadd.f32 %v316, %v220
  %v320 = vmul.f32 %v319, %v38
  %v321 = vtanh.pop %v320
  %v322 = vmul.f32 %v321, %v38
  %v323 = vadd.f32 %v322, %v39
  %v324 = vmul.f32 %v323, %v237
  %326 = vrot.lane.b32.xlu0 %v323, 64
  %v327 = vpop.permute.xlu0 %326
  %v329 = vmul.f32 %v323, %v327
  %331 = vrot.lane.b32.xlu0 %v329, 32
  %v332 = vpop.permute.xlu0 %331
  %v334 = vadd.f32 %v324, %v332
  %v335 = vtanh.pop %v334
  %337 = vrot.lane.b32.xlu0 %v335, 64
  %v338 = vpop.permute.xlu0 %337
  %v340 = vmul.f32 %v323, %v338
  %341 = vmatpush.bf16.msra.mxu0 0
  %342 = vmatpush.bf16.msra.mxu0 0
  %343 = vmatpush.bf16.msra.mxu0 0
  %344 = vmatpush.bf16.msra.mxu0 0
  %345 = vmatpush.bf16.msra.mxu0 0
  %346 = vmatpush.bf16.msra.mxu0 0
  %347 = vmatpush.bf16.msra.mxu0 %v120
  %348 = vmatpush.bf16.msra.mxu0 %v119
  %349 = vmatmul.bf16.gmra.mxu0 %v304
  %v350 = vpop.f32.mrf.mxu0
  %v351 = vadd.f32 0.0, %v350
  %v352 = vpop.f32.mrf.mxu0
  %353 = vdwg.mxu0
  %v354 = vadd.f32 %v80, %v351
  %v355 = vmul.f32 %v354, %v38
  %v356 = vtanh.pop %v355
  %v357 = vmul.f32 %v356, %v38
  %v358 = vadd.f32 %v357, %v39
  %v359 = vmul.f32 %v358, %v272
  %361 = vrot.lane.b32.xlu0 %v358, 64
  %v362 = vpop.permute.xlu0 %361
  %v364 = vmul.f32 %v358, %v362
  %366 = vrot.lane.b32.xlu0 %v364, 32
  %v367 = vpop.permute.xlu0 %366
  %v369 = vadd.f32 %v359, %v367
  %v370 = vtanh.pop %v369
  %372 = vrot.lane.b32.xlu0 %v370, 64
  %v373 = vpop.permute.xlu0 %372
  %v375 = vmul.f32 %v358, %v373
  %v376 = vpack.c.bf16 %v375, %v375
  %v377 = vpack.c.bf16 %v340, %v340
  %379 = vrot.lane.b32.xlu0 %v377, 32
  %v380 = vpop.permute.xlu0 %379
  %v382 = vsel %vm123, %v380, 0
  %384 = vmatpush.bf16.msra.mxu0 0
  %385 = vmatpush.bf16.msra.mxu0 0
  %386 = vmatpush.bf16.msra.mxu0 0
  %387 = vmatpush.bf16.msra.mxu0 0
  %388 = vmatpush.bf16.msra.mxu0 0
  %389 = vmatpush.bf16.msra.mxu0 0
  %390 = vmatpush.bf16.msra.mxu0 %v172
  %391 = vmatpush.bf16.msra.mxu0 %v171
  %392 = vmatmul.bf16.gmra.mxu0 %v382
  %v393 = vpop.f32.mrf.mxu0
  %v394 = vadd.f32 0.0, %v393
  %v395 = vpop.f32.mrf.mxu0
  %396 = vdwg.mxu0
  %398 = vrot.lane.b32.xlu0 %v376, 32
  %v399 = vpop.permute.xlu0 %398
  %v401 = vsel %vm123, %v399, 0
  %403 = vmatpush.bf16.msra.mxu0 0
  %404 = vmatpush.bf16.msra.mxu0 0
  %405 = vmatpush.bf16.msra.mxu0 0
  %406 = vmatpush.bf16.msra.mxu0 0
  %407 = vmatpush.bf16.msra.mxu0 0
  %408 = vmatpush.bf16.msra.mxu0 0
  %409 = vmatpush.bf16.msra.mxu0 %v200
  %410 = vmatpush.bf16.msra.mxu0 %v199
  %411 = vmatmul.bf16.gmra.mxu0 %v401
  %v412 = vpop.f32.mrf.mxu0
  %v413 = vadd.f32 %v394, %v412
  %v414 = vpop.f32.mrf.mxu0
  %415 = vdwg.mxu0
  %v416 = vadd.f32 %v413, %v220
  %v417 = vmul.f32 %v416, %v38
  %v418 = vtanh.pop %v417
  %v419 = vmul.f32 %v418, %v38
  %v420 = vadd.f32 %v419, %v39
  %v421 = vmul.f32 %v420, %v334
  %423 = vrot.lane.b32.xlu0 %v420, 64
  %v424 = vpop.permute.xlu0 %423
  %v426 = vmul.f32 %v420, %v424
  %428 = vrot.lane.b32.xlu0 %v426, 32
  %v429 = vpop.permute.xlu0 %428
  %v431 = vadd.f32 %v421, %v429
  %v432 = vtanh.pop %v431
  %434 = vrot.lane.b32.xlu0 %v432, 64
  %v435 = vpop.permute.xlu0 %434
  %v437 = vmul.f32 %v420, %v435
  %438 = vmatpush.bf16.msra.mxu0 0
  %439 = vmatpush.bf16.msra.mxu0 0
  %440 = vmatpush.bf16.msra.mxu0 0
  %441 = vmatpush.bf16.msra.mxu0 0
  %442 = vmatpush.bf16.msra.mxu0 0
  %443 = vmatpush.bf16.msra.mxu0 0
  %444 = vmatpush.bf16.msra.mxu0 %v120
  %445 = vmatpush.bf16.msra.mxu0 %v119
  %446 = vmatmul.bf16.gmra.mxu0 %v401
  %v447 = vpop.f32.mrf.mxu0
  %v448 = vadd.f32 0.0, %v447
  %v449 = vpop.f32.mrf.mxu0
  %450 = vdwg.mxu0
  %v451 = vadd.f32 %v86, %v448
  %v452 = vmul.f32 %v451, %v38
  %v453 = vtanh.pop %v452
  %v454 = vmul.f32 %v453, %v38
  %v455 = vadd.f32 %v454, %v39
  %v456 = vmul.f32 %v455, %v369
  %458 = vrot.lane.b32.xlu0 %v455, 64
  %v459 = vpop.permute.xlu0 %458
  %v461 = vmul.f32 %v455, %v459
  %463 = vrot.lane.b32.xlu0 %v461, 32
  %v464 = vpop.permute.xlu0 %463
  %v466 = vadd.f32 %v456, %v464
  %v467 = vtanh.pop %v466
  %469 = vrot.lane.b32.xlu0 %v467, 64
  %v470 = vpop.permute.xlu0 %469
  %v472 = vmul.f32 %v455, %v470
  %v473 = vpack.c.bf16 %v472, %v472
  %v474 = vpack.c.bf16 %v437, %v437
  %476 = vrot.lane.b32.xlu0 %v474, 32
  %v477 = vpop.permute.xlu0 %476
  %v479 = vsel %vm123, %v477, 0
  %481 = vmatpush.bf16.msra.mxu0 0
  %482 = vmatpush.bf16.msra.mxu0 0
  %483 = vmatpush.bf16.msra.mxu0 0
  %484 = vmatpush.bf16.msra.mxu0 0
  %485 = vmatpush.bf16.msra.mxu0 0
  %486 = vmatpush.bf16.msra.mxu0 0
  %487 = vmatpush.bf16.msra.mxu0 %v172
  %488 = vmatpush.bf16.msra.mxu0 %v171
  %489 = vmatmul.bf16.gmra.mxu0 %v479
  %v490 = vpop.f32.mrf.mxu0
  %v491 = vadd.f32 0.0, %v490
  %v492 = vpop.f32.mrf.mxu0
  %493 = vdwg.mxu0
  %495 = vrot.lane.b32.xlu0 %v473, 32
  %v496 = vpop.permute.xlu0 %495
  %v498 = vsel %vm123, %v496, 0
  %500 = vmatpush.bf16.msra.mxu0 0
  %501 = vmatpush.bf16.msra.mxu0 0
  %502 = vmatpush.bf16.msra.mxu0 0
  %503 = vmatpush.bf16.msra.mxu0 0
  %504 = vmatpush.bf16.msra.mxu0 0
  %505 = vmatpush.bf16.msra.mxu0 0
  %506 = vmatpush.bf16.msra.mxu0 %v200
  %507 = vmatpush.bf16.msra.mxu0 %v199
  %508 = vmatmul.bf16.gmra.mxu0 %v498
  %v509 = vpop.f32.mrf.mxu0
  %v510 = vadd.f32 %v491, %v509
  %v511 = vpop.f32.mrf.mxu0
  %512 = vdwg.mxu0
  %v513 = vadd.f32 %v510, %v220
  %v514 = vmul.f32 %v513, %v38
  %v515 = vtanh.pop %v514
  %v516 = vmul.f32 %v515, %v38
  %v517 = vadd.f32 %v516, %v39
  %v518 = vmul.f32 %v517, %v431
  %520 = vrot.lane.b32.xlu0 %v517, 64
  %v521 = vpop.permute.xlu0 %520
  %v523 = vmul.f32 %v517, %v521
  %525 = vrot.lane.b32.xlu0 %v523, 32
  %v526 = vpop.permute.xlu0 %525
  %v528 = vadd.f32 %v518, %v526
  %v529 = vtanh.pop %v528
  %531 = vrot.lane.b32.xlu0 %v529, 64
  %v532 = vpop.permute.xlu0 %531
  %v534 = vmul.f32 %v517, %v532
  %535 = vmatpush.bf16.msra.mxu0 0
  %536 = vmatpush.bf16.msra.mxu0 0
  %537 = vmatpush.bf16.msra.mxu0 0
  %538 = vmatpush.bf16.msra.mxu0 0
  %539 = vmatpush.bf16.msra.mxu0 0
  %540 = vmatpush.bf16.msra.mxu0 0
  %541 = vmatpush.bf16.msra.mxu0 %v120
  %542 = vmatpush.bf16.msra.mxu0 %v119
  %543 = vmatmul.bf16.gmra.mxu0 %v498
  %v544 = vpop.f32.mrf.mxu0
  %v545 = vadd.f32 0.0, %v544
  %v546 = vpop.f32.mrf.mxu0
  %547 = vdwg.mxu0
  %v548 = vadd.f32 %v92, %v545
  %v549 = vmul.f32 %v548, %v38
  %v550 = vtanh.pop %v549
  %v551 = vmul.f32 %v550, %v38
  %v552 = vadd.f32 %v551, %v39
  %v553 = vmul.f32 %v552, %v466
  %555 = vrot.lane.b32.xlu0 %v552, 64
  %v556 = vpop.permute.xlu0 %555
  %v558 = vmul.f32 %v552, %v556
  %560 = vrot.lane.b32.xlu0 %v558, 32
  %v561 = vpop.permute.xlu0 %560
  %v563 = vadd.f32 %v553, %v561
  %v564 = vtanh.pop %v563
  %566 = vrot.lane.b32.xlu0 %v564, 64
  %v567 = vpop.permute.xlu0 %566
  %v569 = vmul.f32 %v552, %v567
  %v570 = vpack.c.bf16 %v569, %v569
  %v571 = vpack.c.bf16 %v534, %v534
  %573 = vrot.lane.b32.xlu0 %v571, 32
  %v574 = vpop.permute.xlu0 %573
  %v576 = vsel %vm123, %v574, 0
  %578 = vmatpush.bf16.msra.mxu0 0
  %579 = vmatpush.bf16.msra.mxu0 0
  %580 = vmatpush.bf16.msra.mxu0 0
  %581 = vmatpush.bf16.msra.mxu0 0
  %582 = vmatpush.bf16.msra.mxu0 0
  %583 = vmatpush.bf16.msra.mxu0 0
  %584 = vmatpush.bf16.msra.mxu0 %v172
  %585 = vmatpush.bf16.msra.mxu0 %v171
  %586 = vmatmul.bf16.gmra.mxu0 %v576
  %v587 = vpop.f32.mrf.mxu0
  %v588 = vadd.f32 0.0, %v587
  %v589 = vpop.f32.mrf.mxu0
  %590 = vdwg.mxu0
  %592 = vrot.lane.b32.xlu0 %v570, 32
  %v593 = vpop.permute.xlu0 %592
  %v595 = vsel %vm123, %v593, 0
  %597 = vmatpush.bf16.msra.mxu0 0
  %598 = vmatpush.bf16.msra.mxu0 0
  %599 = vmatpush.bf16.msra.mxu0 0
  %600 = vmatpush.bf16.msra.mxu0 0
  %601 = vmatpush.bf16.msra.mxu0 0
  %602 = vmatpush.bf16.msra.mxu0 0
  %603 = vmatpush.bf16.msra.mxu0 %v200
  %604 = vmatpush.bf16.msra.mxu0 %v199
  %605 = vmatmul.bf16.gmra.mxu0 %v595
  %v606 = vpop.f32.mrf.mxu0
  %v607 = vadd.f32 %v588, %v606
  %v608 = vpop.f32.mrf.mxu0
  %609 = vdwg.mxu0
  %v610 = vadd.f32 %v607, %v220
  %v611 = vmul.f32 %v610, %v38
  %v612 = vtanh.pop %v611
  %v613 = vmul.f32 %v612, %v38
  %v614 = vadd.f32 %v613, %v39
  %v615 = vmul.f32 %v614, %v528
  %617 = vrot.lane.b32.xlu0 %v614, 64
  %v618 = vpop.permute.xlu0 %617
  %v620 = vmul.f32 %v614, %v618
  %622 = vrot.lane.b32.xlu0 %v620, 32
  %v623 = vpop.permute.xlu0 %622
  %v625 = vadd.f32 %v615, %v623
  %v626 = vtanh.pop %v625
  %628 = vrot.lane.b32.xlu0 %v626, 64
  %v629 = vpop.permute.xlu0 %628
  %v631 = vmul.f32 %v614, %v629
  %632 = vmatpush.bf16.msra.mxu0 0
  %633 = vmatpush.bf16.msra.mxu0 0
  %634 = vmatpush.bf16.msra.mxu0 0
  %635 = vmatpush.bf16.msra.mxu0 0
  %636 = vmatpush.bf16.msra.mxu0 0
  %637 = vmatpush.bf16.msra.mxu0 0
  %638 = vmatpush.bf16.msra.mxu0 %v120
  %639 = vmatpush.bf16.msra.mxu0 %v119
  %640 = vmatmul.bf16.gmra.mxu0 %v595
  %v641 = vpop.f32.mrf.mxu0
  %v642 = vadd.f32 0.0, %v641
  %v643 = vpop.f32.mrf.mxu0
  %644 = vdwg.mxu0
  %v645 = vadd.f32 %v98, %v642
  %v646 = vmul.f32 %v645, %v38
  %v647 = vtanh.pop %v646
  %v648 = vmul.f32 %v647, %v38
  %v649 = vadd.f32 %v648, %v39
  %v650 = vmul.f32 %v649, %v563
  %652 = vrot.lane.b32.xlu0 %v649, 64
  %v653 = vpop.permute.xlu0 %652
  %v655 = vmul.f32 %v649, %v653
  %657 = vrot.lane.b32.xlu0 %v655, 32
  %v658 = vpop.permute.xlu0 %657
  %v660 = vadd.f32 %v650, %v658
  %v661 = vtanh.pop %v660
  %663 = vrot.lane.b32.xlu0 %v661, 64
  %v664 = vpop.permute.xlu0 %663
  %v666 = vmul.f32 %v649, %v664
  %v667 = vpack.c.bf16 %v666, %v666
  %v668 = vpack.c.bf16 %v631, %v631
  %670 = vrot.lane.b32.xlu0 %v668, 32
  %v671 = vpop.permute.xlu0 %670
  %v673 = vsel %vm123, %v671, 0
  %675 = vmatpush.bf16.msra.mxu0 0
  %676 = vmatpush.bf16.msra.mxu0 0
  %677 = vmatpush.bf16.msra.mxu0 0
  %678 = vmatpush.bf16.msra.mxu0 0
  %679 = vmatpush.bf16.msra.mxu0 0
  %680 = vmatpush.bf16.msra.mxu0 0
  %681 = vmatpush.bf16.msra.mxu0 %v172
  %682 = vmatpush.bf16.msra.mxu0 %v171
  %683 = vmatmul.bf16.gmra.mxu0 %v673
  %v684 = vpop.f32.mrf.mxu0
  %v685 = vadd.f32 0.0, %v684
  %v686 = vpop.f32.mrf.mxu0
  %687 = vdwg.mxu0
  %689 = vrot.lane.b32.xlu0 %v667, 32
  %v690 = vpop.permute.xlu0 %689
  %v692 = vsel %vm123, %v690, 0
  %694 = vmatpush.bf16.msra.mxu0 0
  %695 = vmatpush.bf16.msra.mxu0 0
  %696 = vmatpush.bf16.msra.mxu0 0
  %697 = vmatpush.bf16.msra.mxu0 0
  %698 = vmatpush.bf16.msra.mxu0 0
  %699 = vmatpush.bf16.msra.mxu0 0
  %700 = vmatpush.bf16.msra.mxu0 %v200
  %701 = vmatpush.bf16.msra.mxu0 %v199
  %702 = vmatmul.bf16.gmra.mxu0 %v692
  %v703 = vpop.f32.mrf.mxu0
  %v704 = vadd.f32 %v685, %v703
  %v705 = vpop.f32.mrf.mxu0
  %706 = vdwg.mxu0
  %v707 = vadd.f32 %v704, %v220
  %v708 = vmul.f32 %v707, %v38
  %v709 = vtanh.pop %v708
  %v710 = vmul.f32 %v709, %v38
  %v711 = vadd.f32 %v710, %v39
  %v712 = vmul.f32 %v711, %v625
  %714 = vrot.lane.b32.xlu0 %v711, 64
  %v715 = vpop.permute.xlu0 %714
  %v717 = vmul.f32 %v711, %v715
  %719 = vrot.lane.b32.xlu0 %v717, 32
  %v720 = vpop.permute.xlu0 %719
  %v722 = vadd.f32 %v712, %v720
  %v723 = vtanh.pop %v722
  %725 = vrot.lane.b32.xlu0 %v723, 64
  %v726 = vpop.permute.xlu0 %725
  %v728 = vmul.f32 %v711, %v726
  %729 = vmatpush.bf16.msra.mxu0 0
  %730 = vmatpush.bf16.msra.mxu0 0
  %731 = vmatpush.bf16.msra.mxu0 0
  %732 = vmatpush.bf16.msra.mxu0 0
  %733 = vmatpush.bf16.msra.mxu0 0
  %734 = vmatpush.bf16.msra.mxu0 0
  %735 = vmatpush.bf16.msra.mxu0 %v120
  %736 = vmatpush.bf16.msra.mxu0 %v119
  %737 = vmatmul.bf16.gmra.mxu0 %v692
  %v738 = vpop.f32.mrf.mxu0
  %v739 = vadd.f32 0.0, %v738
  %v740 = vpop.f32.mrf.mxu0
  %741 = vdwg.mxu0
  %v742 = vadd.f32 %v104, %v739
  %v743 = vmul.f32 %v742, %v38
  %v744 = vtanh.pop %v743
  %v745 = vmul.f32 %v744, %v38
  %v746 = vadd.f32 %v745, %v39
  %v747 = vmul.f32 %v746, %v660
  %749 = vrot.lane.b32.xlu0 %v746, 64
  %v750 = vpop.permute.xlu0 %749
  %v752 = vmul.f32 %v746, %v750
  %754 = vrot.lane.b32.xlu0 %v752, 32
  %v755 = vpop.permute.xlu0 %754
  %v757 = vadd.f32 %v747, %v755
  %v758 = vtanh.pop %v757
  %760 = vrot.lane.b32.xlu0 %v758, 64
  %v761 = vpop.permute.xlu0 %760
  %v763 = vmul.f32 %v746, %v761
  %v764 = vpack.c.bf16 %v763, %v763
  %v765 = vpack.c.bf16 %v728, %v728
  %767 = vrot.lane.b32.xlu0 %v765, 32
  %v768 = vpop.permute.xlu0 %767
  %v770 = vsel %vm123, %v768, 0
  %772 = vmatpush.bf16.msra.mxu0 0
  %773 = vmatpush.bf16.msra.mxu0 0
  %774 = vmatpush.bf16.msra.mxu0 0
  %775 = vmatpush.bf16.msra.mxu0 0
  %776 = vmatpush.bf16.msra.mxu0 0
  %777 = vmatpush.bf16.msra.mxu0 0
  %778 = vmatpush.bf16.msra.mxu0 %v172
  %779 = vmatpush.bf16.msra.mxu0 %v171
  %780 = vmatmul.bf16.gmra.mxu0 %v770
  %v781 = vpop.f32.mrf.mxu0
  %v782 = vadd.f32 0.0, %v781
  %v783 = vpop.f32.mrf.mxu0
  %784 = vdwg.mxu0
  %786 = vrot.lane.b32.xlu0 %v764, 32
  %v787 = vpop.permute.xlu0 %786
  %v789 = vsel %vm123, %v787, 0
  %791 = vmatpush.bf16.msra.mxu0 0
  %792 = vmatpush.bf16.msra.mxu0 0
  %793 = vmatpush.bf16.msra.mxu0 0
  %794 = vmatpush.bf16.msra.mxu0 0
  %795 = vmatpush.bf16.msra.mxu0 0
  %796 = vmatpush.bf16.msra.mxu0 0
  %797 = vmatpush.bf16.msra.mxu0 %v200
  %798 = vmatpush.bf16.msra.mxu0 %v199
  %799 = vmatmul.bf16.gmra.mxu0 %v789
  %v800 = vpop.f32.mrf.mxu0
  %v801 = vadd.f32 %v782, %v800
  %v802 = vpop.f32.mrf.mxu0
  %803 = vdwg.mxu0
  %v804 = vadd.f32 %v801, %v220
  %v805 = vmul.f32 %v804, %v38
  %v806 = vtanh.pop %v805
  %v807 = vmul.f32 %v806, %v38
  %v808 = vadd.f32 %v807, %v39
  %v809 = vmul.f32 %v808, %v722
  %811 = vrot.lane.b32.xlu0 %v808, 64
  %v812 = vpop.permute.xlu0 %811
  %v814 = vmul.f32 %v808, %v812
  %816 = vrot.lane.b32.xlu0 %v814, 32
  %v817 = vpop.permute.xlu0 %816
  %v819 = vadd.f32 %v809, %v817
  %v820 = vtanh.pop %v819
  %822 = vrot.lane.b32.xlu0 %v820, 64
  %v823 = vpop.permute.xlu0 %822
  %v825 = vmul.f32 %v808, %v823
  %826 = vmatpush.bf16.msra.mxu0 0
  %827 = vmatpush.bf16.msra.mxu0 0
  %828 = vmatpush.bf16.msra.mxu0 0
  %829 = vmatpush.bf16.msra.mxu0 0
  %830 = vmatpush.bf16.msra.mxu0 0
  %831 = vmatpush.bf16.msra.mxu0 0
  %832 = vmatpush.bf16.msra.mxu0 %v120
  %833 = vmatpush.bf16.msra.mxu0 %v119
  %834 = vmatmul.bf16.gmra.mxu0 %v789
  %v835 = vpop.f32.mrf.mxu0
  %v836 = vadd.f32 0.0, %v835
  %v837 = vpop.f32.mrf.mxu0
  %838 = vdwg.mxu0
  %v839 = vadd.f32 %v110, %v836
  %v840 = vmul.f32 %v839, %v38
  %v841 = vtanh.pop %v840
  %v842 = vmul.f32 %v841, %v38
  %v843 = vadd.f32 %v842, %v39
  %v844 = vmul.f32 %v843, %v757
  %846 = vrot.lane.b32.xlu0 %v843, 64
  %v847 = vpop.permute.xlu0 %846
  %v849 = vmul.f32 %v843, %v847
  %851 = vrot.lane.b32.xlu0 %v849, 32
  %v852 = vpop.permute.xlu0 %851
  %v854 = vadd.f32 %v844, %v852
  %v855 = vtanh.pop %v854
  %857 = vrot.lane.b32.xlu0 %v855, 64
  %v858 = vpop.permute.xlu0 %857
  %v860 = vmul.f32 %v843, %v858
  %v861 = vpack.c.bf16 %v860, %v860
  %v862 = vpack.c.bf16 %v825, %v825
  %864 = vrot.lane.b32.xlu0 %v862, 32
  %v865 = vpop.permute.xlu0 %864
  %v867 = vsel %vm123, %v865, 0
  %869 = vmatpush.bf16.msra.mxu0 0
  %870 = vmatpush.bf16.msra.mxu0 0
  %871 = vmatpush.bf16.msra.mxu0 0
  %872 = vmatpush.bf16.msra.mxu0 0
  %873 = vmatpush.bf16.msra.mxu0 0
  %874 = vmatpush.bf16.msra.mxu0 0
  %875 = vmatpush.bf16.msra.mxu0 %v172
  %876 = vmatpush.bf16.msra.mxu0 %v171
  %877 = vmatmul.bf16.gmra.mxu0 %v867
  %v878 = vpop.f32.mrf.mxu0
  %v879 = vadd.f32 0.0, %v878
  %v880 = vpop.f32.mrf.mxu0
  %881 = vdwg.mxu0
  %883 = vrot.lane.b32.xlu0 %v861, 32
  %v884 = vpop.permute.xlu0 %883
  %v886 = vsel %vm123, %v884, 0
  %888 = vmatpush.bf16.msra.mxu0 0
  %889 = vmatpush.bf16.msra.mxu0 0
  %890 = vmatpush.bf16.msra.mxu0 0
  %891 = vmatpush.bf16.msra.mxu0 0
  %892 = vmatpush.bf16.msra.mxu0 0
  %893 = vmatpush.bf16.msra.mxu0 0
  %894 = vmatpush.bf16.msra.mxu0 %v200
  %895 = vmatpush.bf16.msra.mxu0 %v199
  %896 = vmatmul.bf16.gmra.mxu0 %v886
  %v897 = vpop.f32.mrf.mxu0
  %v898 = vadd.f32 %v879, %v897
  %v899 = vpop.f32.mrf.mxu0
  %900 = vdwg.mxu0
  %v901 = vadd.f32 %v898, %v220
  %v902 = vmul.f32 %v901, %v38
  %v903 = vtanh.pop %v902
  %v904 = vmul.f32 %v903, %v38
  %v905 = vadd.f32 %v904, %v39
  %v906 = vmul.f32 %v905, %v819
  %908 = vrot.lane.b32.xlu0 %v905, 64
  %v909 = vpop.permute.xlu0 %908
  %v911 = vmul.f32 %v905, %v909
  %913 = vrot.lane.b32.xlu0 %v911, 32
  %v914 = vpop.permute.xlu0 %913
  %v916 = vadd.f32 %v906, %v914
  %v917 = vtanh.pop %v916
  %919 = vrot.lane.b32.xlu0 %v917, 64
  %v920 = vpop.permute.xlu0 %919
  %v922 = vmul.f32 %v905, %v920
  %v923 = vpack.c.bf16 %v922, %v922
  %v924 = vld [vmem:[%s7] sm:$0xf]
  %v925 = vld [vmem:[%s7 + $0x4] sm:$0xf]
  %v926 = vld [vmem:[%s7 + $0x8] sm:$0xf]
  %v927 = vld [vmem:[%s7 + $0xc] sm:$0xf]
  %v928 = vld [vmem:[%s8] sm:$0x1]
  %v930 = vperm.slane %v928, 0
  %933 = vrot.lane.b32.xlu0 %v923, 32
  %v934 = vpop.permute.xlu0 %933
  %v939 = vunpack.c.l.b16 %v924
  %v940 = vunpack.c.l.b16 %v925
  %v941 = vunpack.c.l.b16 %v926
  %v942 = vunpack.c.l.b16 %v927
  %v943 = vpack.c.b16 %v940, %v939
  %v944 = vpack.c.b16 %v942, %v941
  %v948 = vsel %vm123, %v934, 0
  %950 = vmatpush.bf16.msra.mxu0 0
  %951 = vmatpush.bf16.msra.mxu0 0
  %952 = vmatpush.bf16.msra.mxu0 0
  %953 = vmatpush.bf16.msra.mxu0 0
  %954 = vmatpush.bf16.msra.mxu0 0
  %955 = vmatpush.bf16.msra.mxu0 0
  %956 = vmatpush.bf16.msra.mxu0 %v944
  %957 = vmatpush.bf16.msra.mxu0 %v943
  %958 = vmatmul.bf16.gmra.mxu0 %v948
  %v959 = vpop.f32.mrf.mxu0
  %v960 = vadd.f32 %v930, %v959
  %v961 = vpop.f32.mrf.mxu0
  %962 = vdwg.mxu0
  %vm963 = vcmask 31744
  %964 = vst.msk [vmem:[%s9] sm:$0xff] %vm963, %v960
  // Predicated region
  $region38: #{fbf_lstm_forward.1} parent=0 // pred_check
    _
  $region39: #{fbf_lstm_forward.1} parent=0 // pred_check_branch
    %966 = sbr.rel (0) target = $region41
  $region40: #{fbf_lstm_forward.1} parent=0 // pred_region
    _
  $region41: #{fbf_lstm_forward.1} parent=0 // pred_fallthru
    _
  // Predicated region
  $region42: #{fbf_lstm_forward.1} parent=0 // pred_check
    _
  $region43: #{fbf_lstm_forward.1} parent=0 // pred_check_branch
    %968 = sbr.rel (0) target = $region45
  $region44: #{fbf_lstm_forward.1} parent=0 // pred_region
    _
  $region45: #{fbf_lstm_forward.1} parent=0 // pred_fallthru
    _

</llo_original>
